<compile_context>
chip_gen: v6e
topology: v6e:2x2x1
jax: 0.10.0
libtpu: 0.0.40
codegen_flags: <defaults>
</compile_context>

<pallas_src>
import math
import functools

import jax
import jax.numpy as jnp
from jax.experimental import pallas as pl
from jax.experimental.pallas import tpu as pltpu


def _round_up(x, m):
    return ((x + m - 1) // m) * m


# --------------------------------------------------------------------------- kernel
def _entropy_linear_kernel(x_ref, w_ref, b_ref, o_ref, *, inv_temperature):
    # x_ref : (B, IN)           f32  (constant block index -> DMA'd once, stays resident)
    # w_ref : (c_blk, OUT, IN)  f32  weight slab for this block of classes
    # b_ref : (c_blk, 1, OUT)   f32
    # o_ref : (B, c_blk, OUT)   f32  -- maps straight into the final (B, C, OUT) output
    x = x_ref[...]                                                   # (B, IN)
    w = w_ref[...]                                                   # (Cb, OUT, IN)
    n_cls, n_out, _ = w.shape

    # gamma_c[i] = sum_o |W[c, o, i]|.  Do the OUT reduction on the MXU (idle in this
    # HBM-bound kernel) with f32 accumulation: ones(1, OUT) @ |W_c|.
    ones_row = jnp.ones((n_cls, 1, n_out), dtype=w.dtype)
    gamma = jnp.einsum("cxo,coi->cxi", ones_row, jnp.abs(w),
                       preferred_element_type=jnp.float32)           # (Cb, 1, IN)

    # softmax(g/T)/max(softmax(g/T)) == exp((g - max_in g)/T); exponent <= 0 so this
    # is exact and numerically stable.
    alpha_norm = jnp.exp(
        (gamma - jnp.max(gamma, axis=-1, keepdims=True)) * inv_temperature)  # (Cb,1,IN)

    # Masked input and batched MXU matmul (contraction on IN, no explicit W.T),
    # f32 operands / f32 accumulation to keep parity with the PyTorch module.
    xm = x[None, :, :] * alpha_norm                                  # (Cb, B, IN)
    y = jnp.einsum("cbi,coi->cbo", xm, w,
                   preferred_element_type=jnp.float32) + b_ref[...]  # (Cb, B, OUT)

    # Store straight into the (B, c_blk, OUT) block: class-major -> batch-major via
    # small static per-class sublane stores; avoids both an external transpose pass
    # over the output and a 3-D relayout inside the kernel.
    # TODO(synk): collapse to a single `o_ref[...] = jnp.swapaxes(y, 0, 1)` store once
    # that 3-D relayout is known-good in the deployed Mosaic version.
    for c in range(n_cls):
        o_ref[:, c, :] = y[c]


# ----------------------------------------------------------------------- planning
def _vmem_capacity_bytes():
    try:
        return int(pltpu.get_tpu_info().vmem_capacity_bytes)
    except Exception:
        return 64 * 1024 * 1024  # conservative fallback (v7x per-TC VMEM)


def _plan_class_block(C_pad, IN_pad, OUT_pad,
                      target_lo=2 * 1024 * 1024, target_hi=8 * 1024 * 1024,
                      min_steps=4):
    """Classes per grid step.

    * c_blk is a multiple of 8 (or the whole padded class axis) so the
      (c_blk, OUT) trailing dims of the output block satisfy the (8, 128) rule.
    * W slab per buffer targets 2-8 MiB: amortizes the ~0.35us/step overhead while
      leaving headroom on v7x's 64 MiB VMEM.
    * Prefer >= min_steps grid steps so the W DMA keeps overlapping after the
      'parallel' class axis is split across TensorCores.
    """
    per_class_w = OUT_pad * IN_pad * 4                       # f32 bytes per class
    candidates = [d for d in range(8, C_pad + 1, 8) if C_pad % d == 0]
    if not candidates:                                       # C_pad < 8 (shouldn't happen)
        return C_pad
    fitting = [d for d in candidates if d * per_class_w <= target_hi]
    if not fitting:
        # Even 8 classes exceed the slab target (very large OUT*IN): take the
        # smallest legal block.  TODO(synk): add an IN grid axis (with partial-gamma
        # accumulation) for layers this large.
        return candidates[0]
    multi = [d for d in fitting if C_pad // d >= min_steps]
    pool = multi if multi else fitting
    preferred = [d for d in pool if d * per_class_w >= target_lo]
    return max(preferred) if preferred else max(pool)


def _estimate_vmem_bytes(c_blk, B, IN_pad, OUT_pad):
    """Rough per-step VMEM footprint (double-buffered pipeline + in-kernel values)."""
    b_sub = _round_up(max(B, 1), 8)
    c_sub = _round_up(c_blk, 8)
    w_blk = c_blk * OUT_pad * IN_pad * 4
    b_blk = c_blk * 8 * OUT_pad * 4
    o_blk = B * c_sub * OUT_pad * 4
    x_blk = b_sub * IN_pad * 4
    pipelined = 2 * (w_blk + b_blk + o_blk + x_blk)
    scratch = (w_blk                          # |W|
               + c_blk * b_sub * IN_pad * 4   # xm
               + c_blk * b_sub * OUT_pad * 4  # y
               + 2 * c_blk * 8 * IN_pad * 4)  # gamma / alpha_norm
    return pipelined + scratch


# ------------------------------------------------------------------------ wrapper
def entropy_linear_forward(x, weight, bias, temperature=0.6):
    """x: (B, IN) or (1, B, IN); weight: (C, OUT, IN); bias: (C, 1, OUT).
    Returns (B, C, OUT), matching the PyTorch module's forward."""
    if x.ndim == 3:
        assert x.shape[0] == 1, "only a leading singleton batch dim is supported"
        x = x[0]
    x = x.astype(jnp.float32)
    weight = weight.astype(jnp.float32)
    bias = bias.astype(jnp.float32)

    B, IN = x.shape
    C, OUT, IN_w = weight.shape
    assert IN_w == IN and bias.shape == (C, 1, OUT)

    # Lane/sublane alignment (no-ops when the layer is already aligned; store
    # production weights pre-padded to avoid this extra pass entirely).
    IN_p, OUT_p, C_p = _round_up(IN, 128), _round_up(OUT, 128), _round_up(C, 8)
    padded = (IN_p, OUT_p, C_p) != (IN, OUT, C)
    if padded:
        x = jnp.pad(x, ((0, 0), (0, IN_p - IN)))
        weight = jnp.pad(weight, ((0, C_p - C), (0, OUT_p - OUT), (0, IN_p - IN)))
        bias = jnp.pad(bias, ((0, C_p - C), (0, 0), (0, OUT_p - OUT)))

    c_blk = _plan_class_block(C_p, IN_p, OUT_p)
    cap = _vmem_capacity_bytes()
    est = _estimate_vmem_bytes(c_blk, B, IN_p, OUT_p)
    vmem_limit = int(min(cap, max(est + 8 * 1024 * 1024, 32 * 1024 * 1024)))

    kernel = functools.partial(_entropy_linear_kernel,
                               inv_temperature=1.0 / float(temperature))

    out = pl.pallas_call(
        kernel,
        out_shape=jax.ShapeDtypeStruct((B, C_p, OUT_p), jnp.float32),
        grid_spec=pltpu.PrefetchScalarGridSpec(
            num_scalar_prefetch=0,
            grid=(C_p // c_blk,),
            in_specs=[
                pl.BlockSpec((B, IN_p), lambda c: (0, 0)),               # x (resident)
                pl.BlockSpec((c_blk, OUT_p, IN_p), lambda c: (c, 0, 0)),  # W block
                pl.BlockSpec((c_blk, 1, OUT_p), lambda c: (c, 0, 0)),     # bias block
            ],
            out_specs=pl.BlockSpec((B, c_blk, OUT_p), lambda c: (0, c, 0)),
        ),
        compiler_params=pltpu.CompilerParams(
            dimension_semantics=("parallel",),
            vmem_limit_bytes=vmem_limit,
        ),
    )(x, weight, bias)

    if padded:
        out = out[:, :C, :OUT]
    return out


# ----------------------------------------------------------------- reference & init
def _reference_forward(x, weight, bias, temperature=0.6):
    """Pure-JAX f32 transcription of the PyTorch forward (spec semantics)."""
    if x.ndim == 2:
        x = x[None]
    gamma = jnp.sum(jnp.abs(weight), axis=1)                         # (C, IN)
    e = jnp.exp(gamma / temperature)
    alpha = e / jnp.sum(e, axis=1, keepdims=True)
    alpha_norm = alpha / jnp.max(alpha, axis=1, keepdims=True)
    xm = x * alpha_norm[:, None, :]                                  # (C, B, IN)
    y = jnp.einsum("cbi,coi->cbo", xm, weight) + bias                # (C, B, OUT)
    return jnp.transpose(y, (1, 0, 2))                               # (B, C, OUT)


def _init_params(key, in_features, out_features, n_classes):
    """Deterministic init mimicking the module's reset_parameters bounds."""
    kw, kb = jax.random.split(key)
    fan_in = out_features * in_features
    w_bound = math.sqrt(1.0 / fan_in)
    weight = jax.random.uniform(
        kw, (n_classes, out_features, in_features),
        minval=-w_bound, maxval=w_bound, dtype=jnp.float32)
    b_bound = 1.0 / math.sqrt(fan_in)
    bias = jax.random.uniform(
        kb, (n_classes, 1, out_features),
        minval=-b_bound, maxval=b_bound, dtype=jnp.float32)
    return weight, bias


if __name__ == "__main__":
    # Small shapes consistent with the module.
    B, IN, OUT, C = 2, 32, 16, 4
    TEMPERATURE = 0.6

    key = jax.random.PRNGKey(0)
    kx, kp = jax.random.split(key)
    x = jax.random.normal(kx, (B, IN), dtype=jnp.float32)
    weight, bias = _init_params(kp, IN, OUT, C)

    out = entropy_linear_forward(x, weight, bias, TEMPERATURE)
    out = jax.block_until_ready(out)
    assert out.shape == (B, C, OUT), out.shape

    ref = jax.block_until_ready(_reference_forward(x, weight, bias, TEMPERATURE))
    assert jnp.allclose(out, ref, rtol=3e-2, atol=3e-3), "mismatch vs f32 reference"

    print("KERNEL_OK")
</pallas_src>

<mosaic_0001>
module attributes {stable_mosaic.version = 11 : i64} {
  func.func @_entropy_linear_kernel(%arg0: i32, %arg1: memref<2x128xf32, #tpu.memory_space<vmem>>, %arg2: memref<8x128x128xf32, #tpu.memory_space<vmem>>, %arg3: memref<8x1x128xf32, #tpu.memory_space<vmem>>, %arg4: memref<2x8x128xf32, #tpu.memory_space<vmem>>) attributes {dimension_semantics = [#tpu.dimension_semantics<parallel>], iteration_bounds = array<i64: 1>, scalar_prefetch = 0 : i64, scratch_operands = 0 : i64, tpu.core_type = #tpu.core_type<tc>, window_params = [{pipeline_mode = #tpu.pipeline_mode<synchronous>, transform_indices = @transform_0, window_bounds = array<i64: 2, 128>}, {transform_indices = @transform_1, window_bounds = array<i64: 8, 128, 128>}, {transform_indices = @transform_2, window_bounds = array<i64: 8, 1, 128>}, {transform_indices = @transform_3, window_bounds = array<i64: 2, 8, 128>}]} {
    %c0 = arith.constant 0 : index
    %c0_0 = arith.constant 0 : index
    %0 = vector.load %arg1[%c0, %c0_0] : memref<2x128xf32, #tpu.memory_space<vmem>>, vector<2x128xf32>
    %c0_1 = arith.constant 0 : index
    %c0_2 = arith.constant 0 : index
    %c0_3 = arith.constant 0 : index
    %1 = vector.load %arg2[%c0_1, %c0_2, %c0_3] : memref<8x128x128xf32, #tpu.memory_space<vmem>>, vector<8x128x128xf32>
    %cst = arith.constant 1.000000e+00 : f32
    %2 = vector.broadcast %cst : f32 to vector<8x1x128xf32>
    %3 = math.absf %1 : vector<8x128x128xf32>
    "tpu.trace_start"() <{level = 10 : i32, message = "cxo,coi->cxi"}> : () -> ()
    %cst_4 = arith.constant dense<0.000000e+00> : vector<8x1x128xf32>
    %4 = tpu.matmul %2, %3, %cst_4 {dimension_numbers = #tpu.dot_dimension_numbers<[2], [1], [1], [2], [0, 0, 0, 1, 1, 2], [0], [0]>} : vector<8x1x128xf32>, vector<8x128x128xf32>, vector<8x1x128xf32> -> vector<8x1x128xf32>
    "tpu.trace_stop"() : () -> ()
    %cst_5 = arith.constant dense<0xFF800000> : vector<8x1xf32>
    %5 = vector.multi_reduction <maximumf>, %4, %cst_5 [2] : vector<8x1x128xf32> to vector<8x1xf32>
    %6 = vector.shape_cast %5 : vector<8x1xf32> to vector<8x1x1xf32>
    %7 = vector.broadcast %6 : vector<8x1x1xf32> to vector<8x1x128xf32>
    %8 = arith.subf %4, %7 : vector<8x1x128xf32>
    %cst_6 = arith.constant 1.66666663 : f32
    %9 = vector.broadcast %cst_6 : f32 to vector<8x1x128xf32>
    %10 = arith.mulf %8, %9 : vector<8x1x128xf32>
    %11 = math.exp %10 : vector<8x1x128xf32>
    %12 = vector.shape_cast %0 : vector<2x128xf32> to vector<1x2x128xf32>
    %13 = vector.broadcast %12 : vector<1x2x128xf32> to vector<8x2x128xf32>
    %14 = vector.broadcast %11 : vector<8x1x128xf32> to vector<8x2x128xf32>
    %15 = arith.mulf %13, %14 : vector<8x2x128xf32>
    "tpu.trace_start"() <{level = 10 : i32, message = "cbi,coi->cbo"}> : () -> ()
    %cst_7 = arith.constant dense<0.000000e+00> : vector<8x2x128xf32>
    %16 = tpu.matmul %15, %1, %cst_7 {dimension_numbers = #tpu.dot_dimension_numbers<[2], [2], [1], [1], [0, 0, 0, 1, 1, 1], [0], [0]>} : vector<8x2x128xf32>, vector<8x128x128xf32>, vector<8x2x128xf32> -> vector<8x2x128xf32>
    "tpu.trace_stop"() : () -> ()
    %c0_8 = arith.constant 0 : index
    %c0_9 = arith.constant 0 : index
    %c0_10 = arith.constant 0 : index
    %17 = vector.load %arg3[%c0_8, %c0_9, %c0_10] : memref<8x1x128xf32, #tpu.memory_space<vmem>>, vector<8x1x128xf32>
    %18 = vector.broadcast %17 : vector<8x1x128xf32> to vector<8x2x128xf32>
    %19 = arith.addf %16, %18 : vector<8x2x128xf32>
    %20 = vector.extract_strided_slice %19 {offsets = [0, 0, 0], sizes = [1, 2, 128], strides = [1, 1, 1]} : vector<8x2x128xf32> to vector<1x2x128xf32>
    %21 = vector.shape_cast %20 : vector<1x2x128xf32> to vector<2x128xf32>
    %c0_11 = arith.constant 0 : index
    %c0_12 = arith.constant 0 : index
    %c0_13 = arith.constant 0 : index
    %22 = vector.load %arg4[%c0_11, %c0_12, %c0_13] : memref<2x8x128xf32, #tpu.memory_space<vmem>>, vector<2x1x128xf32>
    %23 = vector.shape_cast %22 : vector<2x1x128xf32> to vector<2x128xf32>
    %24 = vector.shape_cast %21 : vector<2x128xf32> to vector<2x1x128xf32>
    tpu.vector_store %arg4[%c0_11, %c0_12, %c0_13], %24 {strides = array<i32>} : memref<2x8x128xf32, #tpu.memory_space<vmem>>, vector<2x1x128xf32>,
    %25 = vector.extract_strided_slice %19 {offsets = [1, 0, 0], sizes = [1, 2, 128], strides = [1, 1, 1]} : vector<8x2x128xf32> to vector<1x2x128xf32>
    %26 = vector.shape_cast %25 : vector<1x2x128xf32> to vector<2x128xf32>
    %c0_14 = arith.constant 0 : index
    %c1 = arith.constant 1 : index
    %c0_15 = arith.constant 0 : index
    %27 = vector.load %arg4[%c0_14, %c1, %c0_15] : memref<2x8x128xf32, #tpu.memory_space<vmem>>, vector<2x1x128xf32>
    %28 = vector.shape_cast %27 : vector<2x1x128xf32> to vector<2x128xf32>
    %29 = vector.shape_cast %26 : vector<2x128xf32> to vector<2x1x128xf32>
    tpu.vector_store %arg4[%c0_14, %c1, %c0_15], %29 {strides = array<i32>} : memref<2x8x128xf32, #tpu.memory_space<vmem>>, vector<2x1x128xf32>,
    %30 = vector.extract_strided_slice %19 {offsets = [2, 0, 0], sizes = [1, 2, 128], strides = [1, 1, 1]} : vector<8x2x128xf32> to vector<1x2x128xf32>
    %31 = vector.shape_cast %30 : vector<1x2x128xf32> to vector<2x128xf32>
    %c0_16 = arith.constant 0 : index
    %c2 = arith.constant 2 : index
    %c0_17 = arith.constant 0 : index
    %32 = vector.load %arg4[%c0_16, %c2, %c0_17] : memref<2x8x128xf32, #tpu.memory_space<vmem>>, vector<2x1x128xf32>
    %33 = vector.shape_cast %32 : vector<2x1x128xf32> to vector<2x128xf32>
    %34 = vector.shape_cast %31 : vector<2x128xf32> to vector<2x1x128xf32>
    tpu.vector_store %arg4[%c0_16, %c2, %c0_17], %34 {strides = array<i32>} : memref<2x8x128xf32, #tpu.memory_space<vmem>>, vector<2x1x128xf32>,
    %35 = vector.extract_strided_slice %19 {offsets = [3, 0, 0], sizes = [1, 2, 128], strides = [1, 1, 1]} : vector<8x2x128xf32> to vector<1x2x128xf32>
    %36 = vector.shape_cast %35 : vector<1x2x128xf32> to vector<2x128xf32>
    %c0_18 = arith.constant 0 : index
    %c3 = arith.constant 3 : index
    %c0_19 = arith.constant 0 : index
    %37 = vector.load %arg4[%c0_18, %c3, %c0_19] : memref<2x8x128xf32, #tpu.memory_space<vmem>>, vector<2x1x128xf32>
    %38 = vector.shape_cast %37 : vector<2x1x128xf32> to vector<2x128xf32>
    %39 = vector.shape_cast %36 : vector<2x128xf32> to vector<2x1x128xf32>
    tpu.vector_store %arg4[%c0_18, %c3, %c0_19], %39 {strides = array<i32>} : memref<2x8x128xf32, #tpu.memory_space<vmem>>, vector<2x1x128xf32>,
    %40 = vector.extract_strided_slice %19 {offsets = [4, 0, 0], sizes = [1, 2, 128], strides = [1, 1, 1]} : vector<8x2x128xf32> to vector<1x2x128xf32>
    %41 = vector.shape_cast %40 : vector<1x2x128xf32> to vector<2x128xf32>
    %c0_20 = arith.constant 0 : index
    %c4 = arith.constant 4 : index
    %c0_21 = arith.constant 0 : index
    %42 = vector.load %arg4[%c0_20, %c4, %c0_21] : memref<2x8x128xf32, #tpu.memory_space<vmem>>, vector<2x1x128xf32>
    %43 = vector.shape_cast %42 : vector<2x1x128xf32> to vector<2x128xf32>
    %44 = vector.shape_cast %41 : vector<2x128xf32> to vector<2x1x128xf32>
    tpu.vector_store %arg4[%c0_20, %c4, %c0_21], %44 {strides = array<i32>} : memref<2x8x128xf32, #tpu.memory_space<vmem>>, vector<2x1x128xf32>,
    %45 = vector.extract_strided_slice %19 {offsets = [5, 0, 0], sizes = [1, 2, 128], strides = [1, 1, 1]} : vector<8x2x128xf32> to vector<1x2x128xf32>
    %46 = vector.shape_cast %45 : vector<1x2x128xf32> to vector<2x128xf32>
    %c0_22 = arith.constant 0 : index
    %c5 = arith.constant 5 : index
    %c0_23 = arith.constant 0 : index
    %47 = vector.load %arg4[%c0_22, %c5, %c0_23] : memref<2x8x128xf32, #tpu.memory_space<vmem>>, vector<2x1x128xf32>
    %48 = vector.shape_cast %47 : vector<2x1x128xf32> to vector<2x128xf32>
    %49 = vector.shape_cast %46 : vector<2x128xf32> to vector<2x1x128xf32>
    tpu.vector_store %arg4[%c0_22, %c5, %c0_23], %49 {strides = array<i32>} : memref<2x8x128xf32, #tpu.memory_space<vmem>>, vector<2x1x128xf32>,
    %50 = vector.extract_strided_slice %19 {offsets = [6, 0, 0], sizes = [1, 2, 128], strides = [1, 1, 1]} : vector<8x2x128xf32> to vector<1x2x128xf32>
    %51 = vector.shape_cast %50 : vector<1x2x128xf32> to vector<2x128xf32>
    %c0_24 = arith.constant 0 : index
    %c6 = arith.constant 6 : index
    %c0_25 = arith.constant 0 : index
    %52 = vector.load %arg4[%c0_24, %c6, %c0_25] : memref<2x8x128xf32, #tpu.memory_space<vmem>>, vector<2x1x128xf32>
    %53 = vector.shape_cast %52 : vector<2x1x128xf32> to vector<2x128xf32>
    %54 = vector.shape_cast %51 : vector<2x128xf32> to vector<2x1x128xf32>
    tpu.vector_store %arg4[%c0_24, %c6, %c0_25], %54 {strides = array<i32>} : memref<2x8x128xf32, #tpu.memory_space<vmem>>, vector<2x1x128xf32>,
    %55 = vector.extract_strided_slice %19 {offsets = [7, 0, 0], sizes = [1, 2, 128], strides = [1, 1, 1]} : vector<8x2x128xf32> to vector<1x2x128xf32>
    %56 = vector.shape_cast %55 : vector<1x2x128xf32> to vector<2x128xf32>
    %c0_26 = arith.constant 0 : index
    %c7 = arith.constant 7 : index
    %c0_27 = arith.constant 0 : index
    %57 = vector.load %arg4[%c0_26, %c7, %c0_27] : memref<2x8x128xf32, #tpu.memory_space<vmem>>, vector<2x1x128xf32>
    %58 = vector.shape_cast %57 : vector<2x1x128xf32> to vector<2x128xf32>
    %59 = vector.shape_cast %56 : vector<2x128xf32> to vector<2x1x128xf32>
    tpu.vector_store %arg4[%c0_26, %c7, %c0_27], %59 {strides = array<i32>} : memref<2x8x128xf32, #tpu.memory_space<vmem>>, vector<2x1x128xf32>,
    return
  }
  func.func @transform_0(%arg0: i32) -> (i32, i32) {
    %c0_i32 = arith.constant 0 : i32
    %c0_i32_0 = arith.constant 0 : i32
    %c0_i32_1 = arith.constant 0 : i32
    return %c0_i32, %c0_i32_0 : i32, i32
  }
  func.func @transform_1(%arg0: i32) -> (i32, i32, i32) {
    %c0_i32 = arith.constant 0 : i32
    %c0_i32_0 = arith.constant 0 : i32
    %c0_i32_1 = arith.constant 0 : i32
    return %arg0, %c0_i32, %c0_i32_0 : i32, i32, i32
  }
  func.func @transform_2(%arg0: i32) -> (i32, i32, i32) {
    %c0_i32 = arith.constant 0 : i32
    %c0_i32_0 = arith.constant 0 : i32
    %c0_i32_1 = arith.constant 0 : i32
    return %arg0, %c0_i32, %c0_i32_0 : i32, i32, i32
  }
  func.func @transform_3(%arg0: i32) -> (i32, i32, i32) {
    %c0_i32 = arith.constant 0 : i32
    %c0_i32_0 = arith.constant 0 : i32
    %c0_i32_1 = arith.constant 0 : i32
    return %c0_i32, %arg0, %c0_i32_0 : i32, i32, i32
  }
}

</mosaic_0001>

<llo_original>
// kernel: tpu_custom_call.1
$region0: #{tpu_custom_call.1}
  #allocation0 [shape = 'u32[]', space=smem, size = 0x4, offset = 0x4, fixed_abs, tag = 'smem constant byte address 0x4 - core index']
  #allocation1 [shape = 'u32[144,128]{1,0:T(1,128)}', space=vmem, size = 0x12000, scoped, tag = 'internal scratch']
  %s0 = inlined_call_operand.hbm [shape: f32[2,128], index: 0, kind: input, shape index: {}]
  %s1 = inlined_call_operand.hbm [shape: f32[8,128,128], index: 1, kind: input, shape index: {}]
  %s2 = inlined_call_operand.hbm [shape: f32[8,1,128], index: 2, kind: input, shape index: {}]
  %s3 = inlined_call_operand.hbm [shape: f32[2,8,128], index: 3, kind: output, shape index: {}]
  %s4 = sld [smem:[#allocation0]]
  $region34: #{tpu_custom_call.1} parent=0
    _
  %s6 = ssub.s32 1, %s4
  %s7 = scalar_select 0, %s6, %s4
  $region1: #{tpu_custom_call.1} parent=0
    #allocation2 [shape = 'u8[1024]{0}', space=vmem, size = 0x400, scoped, tag = 'input window, operand 0, single buffered']
    #allocation3 [shape = 's32[1]{0}', space=sflag, size = 0x4, scoped, tag = 'scoped memory for tpu_custom_call.1']
    #allocation4 [shape = 's32[1]{0}', space=sflag, size = 0x4, scoped, tag = 'scoped memory for tpu_custom_call.1']
    #allocation5 [shape = 'u8[524288]{0}', space=vmem, size = 0x80000, scoped, tag = 'input window, operand 1, single buffered']
    #allocation6 [shape = 's32[1]{0}', space=sflag, size = 0x4, scoped, tag = 'scoped memory for tpu_custom_call.1']
    #allocation7 [shape = 'u8[4096]{0}', space=vmem, size = 0x1000, scoped, tag = 'input window, operand 2, single buffered']
    #allocation8 [shape = 'u8[8192]{0}', space=vmem, size = 0x2000, scoped, tag = 'output window, operand 0, single buffered']
    %8 = vsyncpa [#allocation3], 0
    %9 = vsyncpa [#allocation6], 0
    %10 = vsyncpa [#allocation4], 0
    // Predicated region
    $region2: #{tpu_custom_call.1} parent=1 // pred_check
      _
    $region3: #{tpu_custom_call.1} parent=1 // pred_check_branch
      %12 = sbr.rel (0) target = $region5
    $region4: #{tpu_custom_call.1} parent=1 // pred_region
      %s14 = ssub.s32 32, 32
      %15 = vsyncadd [#allocation3], %s14
      %s17 = sshll.u32 [#allocation2], 4
      %s18 = int_to_ptr.vmem [resolvable:$true] %s17
      %20 = dma.hbm_to_vmem [thread:$0]  %s0, 32, %s18, [#allocation3]
    $region5: #{tpu_custom_call.1} parent=1 // pred_fallthru
      _
    // Predicated region
    $region6: #{tpu_custom_call.1} parent=1 // pred_check
      _
    $region7: #{tpu_custom_call.1} parent=1 // pred_check_branch
      %22 = sbr.rel (0) target = $region9
    $region8: #{tpu_custom_call.1} parent=1 // pred_region
      %s24 = ssub.s32 16384, 16384
      %25 = vsyncadd [#allocation6], %s24
      %s26 = sshll.u32 [#allocation5], 4
      %s27 = int_to_ptr.vmem [resolvable:$true] %s26
      %32 = dma.hbm_to_vmem [thread:$0]  %s1, 16384, %s27, [#allocation6], 128, 128, 8
    $region9: #{tpu_custom_call.1} parent=1 // pred_fallthru
      _
    // Predicated region
    $region10: #{tpu_custom_call.1} parent=1 // pred_check
      _
    $region11: #{tpu_custom_call.1} parent=1 // pred_check_branch
      %34 = sbr.rel (0) target = $region13
    $region12: #{tpu_custom_call.1} parent=1 // pred_region
      %s36 = ssub.s32 128, 128
      %37 = vsyncadd [#allocation6], %s36
      %s38 = sshll.u32 [#allocation7], 4
      %s39 = int_to_ptr.vmem [resolvable:$true] %s38
      %44 = dma.hbm_to_vmem [thread:$0]  %s2, 128, %s39, [#allocation6], 16, 16, 1
    $region13: #{tpu_custom_call.1} parent=1 // pred_fallthru
      _
    // Predicated region
    $region14: #{tpu_custom_call.1} parent=1 // pred_check
      _
    $region15: #{tpu_custom_call.1} parent=1 // pred_check_branch
      %46 = sbr.rel (0) target = $region17
    $region16: #{tpu_custom_call.1} parent=1 // pred_region
      %47 = dma.done [#allocation3], 32
    $region17: #{tpu_custom_call.1} parent=1 // pred_fallthru
      _
    // Predicated region
    $region18: #{tpu_custom_call.1} parent=1 // pred_check
      _
    $region19: #{tpu_custom_call.1} parent=1 // pred_check_branch
      %49 = sbr.rel (0) target = $region21
    $region20: #{tpu_custom_call.1} parent=1 // pred_region
      %50 = dma.done [#allocation6], 16384
    $region21: #{tpu_custom_call.1} parent=1 // pred_fallthru
      _
    // Predicated region
    $region22: #{tpu_custom_call.1} parent=1 // pred_check
      _
    $region23: #{tpu_custom_call.1} parent=1 // pred_check_branch
      %52 = sbr.rel (0) target = $region25
    $region24: #{tpu_custom_call.1} parent=1 // pred_region
      %53 = dma.done [#allocation6], 128
    $region25: #{tpu_custom_call.1} parent=1 // pred_fallthru
      _
    %v54 = vld [vmem:[#allocation2] sm:$0x3]
    %v55 = vld [vmem:[#allocation5] sm:$0xff]
    %v56 = vld [vmem:[#allocation5 + $0x8] sm:$0xff]
    %v57 = vld [vmem:[#allocation5 + $0x10] sm:$0xff]
    %v58 = vld [vmem:[#allocation5 + $0x18] sm:$0xff]
    %v59 = vld [vmem:[#allocation5 + $0x20] sm:$0xff]
    %v60 = vld [vmem:[#allocation5 + $0x28] sm:$0xff]
    %v61 = vld [vmem:[#allocation5 + $0x30] sm:$0xff]
    %v62 = vld [vmem:[#allocation5 + $0x38] sm:$0xff]
    %v63 = vld [vmem:[#allocation5 + $0x40] sm:$0xff]
    %v64 = vld [vmem:[#allocation5 + $0x48] sm:$0xff]
    %v65 = vld [vmem:[#allocation5 + $0x50] sm:$0xff]
    %v66 = vld [vmem:[#allocation5 + $0x58] sm:$0xff]
    %v67 = vld [vmem:[#allocation5 + $0x60] sm:$0xff]
    %v68 = vld [vmem:[#allocation5 + $0x68] sm:$0xff]
    %v69 = vld [vmem:[#allocation5 + $0x70] sm:$0xff]
    %v70 = vld [vmem:[#allocation5 + $0x78] sm:$0xff]
    %v71 = vld [vmem:[#allocation5 + $0x80] sm:$0xff]
    %v72 = vld [vmem:[#allocation5 + $0x88] sm:$0xff]
    %v73 = vld [vmem:[#allocation5 + $0x90] sm:$0xff]
    %v74 = vld [vmem:[#allocation5 + $0x98] sm:$0xff]
    %v75 = vld [vmem:[#allocation5 + $0xa0] sm:$0xff]
    %v76 = vld [vmem:[#allocation5 + $0xa8] sm:$0xff]
    %v77 = vld [vmem:[#allocation5 + $0xb0] sm:$0xff]
    %v78 = vld [vmem:[#allocation5 + $0xb8] sm:$0xff]
    %v79 = vld [vmem:[#allocation5 + $0xc0] sm:$0xff]
    %v80 = vld [vmem:[#allocation5 + $0xc8] sm:$0xff]
    %v81 = vld [vmem:[#allocation5 + $0xd0] sm:$0xff]
    %v82 = vld [vmem:[#allocation5 + $0xd8] sm:$0xff]
    %v83 = vld [vmem:[#allocation5 + $0xe0] sm:$0xff]
    %v84 = vld [vmem:[#allocation5 + $0xe8] sm:$0xff]
    %v85 = vld [vmem:[#allocation5 + $0xf0] sm:$0xff]
    %v86 = vld [vmem:[#allocation5 + $0xf8] sm:$0xff]
    %v87 = vld [vmem:[#allocation5 + $0x100] sm:$0xff]
    %v88 = vld [vmem:[#allocation5 + $0x108] sm:$0xff]
    %v89 = vld [vmem:[#allocation5 + $0x110] sm:$0xff]
    %v90 = vld [vmem:[#allocation5 + $0x118] sm:$0xff]
    %v91 = vld [vmem:[#allocation5 + $0x120] sm:$0xff]
    %v92 = vld [vmem:[#allocation5 + $0x128] sm:$0xff]
    %v93 = vld [vmem:[#allocation5 + $0x130] sm:$0xff]
    %v94 = vld [vmem:[#allocation5 + $0x138] sm:$0xff]
    %v95 = vld [vmem:[#allocation5 + $0x140] sm:$0xff]
    %v96 = vld [vmem:[#allocation5 + $0x148] sm:$0xff]
    %v97 = vld [vmem:[#allocation5 + $0x150] sm:$0xff]
    %v98 = vld [vmem:[#allocation5 + $0x158] sm:$0xff]
    %v99 = vld [vmem:[#allocation5 + $0x160] sm:$0xff]
    %v100 = vld [vmem:[#allocation5 + $0x168] sm:$0xff]
    %v101 = vld [vmem:[#allocation5 + $0x170] sm:$0xff]
    %v102 = vld [vmem:[#allocation5 + $0x178] sm:$0xff]
    %v103 = vld [vmem:[#allocation5 + $0x180] sm:$0xff]
    %v104 = vld [vmem:[#allocation5 + $0x188] sm:$0xff]
    %v105 = vld [vmem:[#allocation5 + $0x190] sm:$0xff]
    %v106 = vld [vmem:[#allocation5 + $0x198] sm:$0xff]
    %v107 = vld [vmem:[#allocation5 + $0x1a0] sm:$0xff]
    %v108 = vld [vmem:[#allocation5 + $0x1a8] sm:$0xff]
    %v109 = vld [vmem:[#allocation5 + $0x1b0] sm:$0xff]
    %v110 = vld [vmem:[#allocation5 + $0x1b8] sm:$0xff]
    %v111 = vld [vmem:[#allocation5 + $0x1c0] sm:$0xff]
    %v112 = vld [vmem:[#allocation5 + $0x1c8] sm:$0xff]
    %v113 = vld [vmem:[#allocation5 + $0x1d0] sm:$0xff]
    %v114 = vld [vmem:[#allocation5 + $0x1d8] sm:$0xff]
    %v115 = vld [vmem:[#allocation5 + $0x1e0] sm:$0xff]
    %v116 = vld [vmem:[#allocation5 + $0x1e8] sm:$0xff]
    %v117 = vld [vmem:[#allocation5 + $0x1f0] sm:$0xff]
    %v118 = vld [vmem:[#allocation5 + $0x1f8] sm:$0xff]
    %v119 = vld [vmem:[#allocation5 + $0x200] sm:$0xff]
    %v120 = vld [vmem:[#allocation5 + $0x208] sm:$0xff]
    %v121 = vld [vmem:[#allocation5 + $0x210] sm:$0xff]
    %v122 = vld [vmem:[#allocation5 + $0x218] sm:$0xff]
    %v123 = vld [vmem:[#allocation5 + $0x220] sm:$0xff]
    %v124 = vld [vmem:[#allocation5 + $0x228] sm:$0xff]
    %v125 = vld [vmem:[#allocation5 + $0x230] sm:$0xff]
    %v126 = vld [vmem:[#allocation5 + $0x238] sm:$0xff]
    %v127 = vld [vmem:[#allocation5 + $0x240] sm:$0xff]
    %v128 = vld [vmem:[#allocation5 + $0x248] sm:$0xff]
    %v129 = vld [vmem:[#allocation5 + $0x250] sm:$0xff]
    %v130 = vld [vmem:[#allocation5 + $0x258] sm:$0xff]
    %v131 = vld [vmem:[#allocation5 + $0x260] sm:$0xff]
    %v132 = vld [vmem:[#allocation5 + $0x268] sm:$0xff]
    %v133 = vld [vmem:[#allocation5 + $0x270] sm:$0xff]
    %v134 = vld [vmem:[#allocation5 + $0x278] sm:$0xff]
    %v135 = vld [vmem:[#allocation5 + $0x280] sm:$0xff]
    %v136 = vld [vmem:[#allocation5 + $0x288] sm:$0xff]
    %v137 = vld [vmem:[#allocation5 + $0x290] sm:$0xff]
    %v138 = vld [vmem:[#allocation5 + $0x298] sm:$0xff]
    %v139 = vld [vmem:[#allocation5 + $0x2a0] sm:$0xff]
    %v140 = vld [vmem:[#allocation5 + $0x2a8] sm:$0xff]
    %v141 = vld [vmem:[#allocation5 + $0x2b0] sm:$0xff]
    %v142 = vld [vmem:[#allocation5 + $0x2b8] sm:$0xff]
    %v143 = vld [vmem:[#allocation5 + $0x2c0] sm:$0xff]
    %v144 = vld [vmem:[#allocation5 + $0x2c8] sm:$0xff]
    %v145 = vld [vmem:[#allocation5 + $0x2d0] sm:$0xff]
    %v146 = vld [vmem:[#allocation5 + $0x2d8] sm:$0xff]
    %v147 = vld [vmem:[#allocation5 + $0x2e0] sm:$0xff]
    %v148 = vld [vmem:[#allocation5 + $0x2e8] sm:$0xff]
    %v149 = vld [vmem:[#allocation5 + $0x2f0] sm:$0xff]
    %v150 = vld [vmem:[#allocation5 + $0x2f8] sm:$0xff]
    %v151 = vld [vmem:[#allocation5 + $0x300] sm:$0xff]
    %v152 = vld [vmem:[#allocation5 + $0x308] sm:$0xff]
    %v153 = vld [vmem:[#allocation5 + $0x310] sm:$0xff]
    %v154 = vld [vmem:[#allocation5 + $0x318] sm:$0xff]
    %v155 = vld [vmem:[#allocation5 + $0x320] sm:$0xff]
    %v156 = vld [vmem:[#allocation5 + $0x328] sm:$0xff]
    %v157 = vld [vmem:[#allocation5 + $0x330] sm:$0xff]
    %v158 = vld [vmem:[#allocation5 + $0x338] sm:$0xff]
    %v159 = vld [vmem:[#allocation5 + $0x340] sm:$0xff]
    %v160 = vld [vmem:[#allocation5 + $0x348] sm:$0xff]
    %v161 = vld [vmem:[#allocation5 + $0x350] sm:$0xff]
    %v162 = vld [vmem:[#allocation5 + $0x358] sm:$0xff]
    %v163 = vld [vmem:[#allocation5 + $0x360] sm:$0xff]
    %v164 = vld [vmem:[#allocation5 + $0x368] sm:$0xff]
    %v165 = vld [vmem:[#allocation5 + $0x370] sm:$0xff]
    %v166 = vld [vmem:[#allocation5 + $0x378] sm:$0xff]
    %v167 = vld [vmem:[#allocation5 + $0x380] sm:$0xff]
    %v168 = vld [vmem:[#allocation5 + $0x388] sm:$0xff]
    %v169 = vld [vmem:[#allocation5 + $0x390] sm:$0xff]
    %v170 = vld [vmem:[#allocation5 + $0x398] sm:$0xff]
    %v171 = vld [vmem:[#allocation5 + $0x3a0] sm:$0xff]
    %v172 = vld [vmem:[#allocation5 + $0x3a8] sm:$0xff]
    %v173 = vld [vmem:[#allocation5 + $0x3b0] sm:$0xff]
    %v174 = vld [vmem:[#allocation5 + $0x3b8] sm:$0xff]
    %v175 = vld [vmem:[#allocation5 + $0x3c0] sm:$0xff]
    %v176 = vld [vmem:[#allocation5 + $0x3c8] sm:$0xff]
    %v177 = vld [vmem:[#allocation5 + $0x3d0] sm:$0xff]
    %v178 = vld [vmem:[#allocation5 + $0x3d8] sm:$0xff]
    %v179 = vld [vmem:[#allocation5 + $0x3e0] sm:$0xff]
    %v180 = vld [vmem:[#allocation5 + $0x3e8] sm:$0xff]
    %v181 = vld [vmem:[#allocation5 + $0x3f0] sm:$0xff]
    %v182 = vld [vmem:[#allocation5 + $0x3f8] sm:$0xff]
    %v183 = vand.u32 2147483647, %v55
    %v184 = vand.u32 2147483647, %v56
    %v185 = vand.u32 2147483647, %v57
    %v186 = vand.u32 2147483647, %v58
    %v187 = vand.u32 2147483647, %v59
    %v188 = vand.u32 2147483647, %v60
    %v189 = vand.u32 2147483647, %v61
    %v190 = vand.u32 2147483647, %v62
    %v191 = vand.u32 2147483647, %v63
    %v192 = vand.u32 2147483647, %v64
    %v193 = vand.u32 2147483647, %v65
    %v194 = vand.u32 2147483647, %v66
    %v195 = vand.u32 2147483647, %v67
    %v196 = vand.u32 2147483647, %v68
    %v197 = vand.u32 2147483647, %v69
    %v198 = vand.u32 2147483647, %v70
    %v199 = vand.u32 2147483647, %v71
    %v200 = vand.u32 2147483647, %v72
    %v201 = vand.u32 2147483647, %v73
    %v202 = vand.u32 2147483647, %v74
    %v203 = vand.u32 2147483647, %v75
    %v204 = vand.u32 2147483647, %v76
    %v205 = vand.u32 2147483647, %v77
    %v206 = vand.u32 2147483647, %v78
    %v207 = vand.u32 2147483647, %v79
    %v208 = vand.u32 2147483647, %v80
    %v209 = vand.u32 2147483647, %v81
    %v210 = vand.u32 2147483647, %v82
    %v211 = vand.u32 2147483647, %v83
    %v212 = vand.u32 2147483647, %v84
    %v213 = vand.u32 2147483647, %v85
    %v214 = vand.u32 2147483647, %v86
    %v215 = vand.u32 2147483647, %v87
    %v216 = vand.u32 2147483647, %v88
    %v217 = vand.u32 2147483647, %v89
    %v218 = vand.u32 2147483647, %v90
    %v219 = vand.u32 2147483647, %v91
    %v220 = vand.u32 2147483647, %v92
    %v221 = vand.u32 2147483647, %v93
    %v222 = vand.u32 2147483647, %v94
    %v223 = vand.u32 2147483647, %v95
    %v224 = vand.u32 2147483647, %v96
    %v225 = vand.u32 2147483647, %v97
    %v226 = vand.u32 2147483647, %v98
    %v227 = vand.u32 2147483647, %v99
    %v228 = vand.u32 2147483647, %v100
    %v229 = vand.u32 2147483647, %v101
    %v230 = vand.u32 2147483647, %v102
    %v231 = vand.u32 2147483647, %v103
    %v232 = vand.u32 2147483647, %v104
    %v233 = vand.u32 2147483647, %v105
    %v234 = vand.u32 2147483647, %v106
    %v235 = vand.u32 2147483647, %v107
    %v236 = vand.u32 2147483647, %v108
    %v237 = vand.u32 2147483647, %v109
    %v238 = vand.u32 2147483647, %v110
    %v239 = vand.u32 2147483647, %v111
    %v240 = vand.u32 2147483647, %v112
    %v241 = vand.u32 2147483647, %v113
    %v242 = vand.u32 2147483647, %v114
    %v243 = vand.u32 2147483647, %v115
    %v244 = vand.u32 2147483647, %v116
    %v245 = vand.u32 2147483647, %v117
    %v246 = vand.u32 2147483647, %v118
    %v247 = vand.u32 2147483647, %v119
    %v248 = vand.u32 2147483647, %v120
    %v249 = vand.u32 2147483647, %v121
    %v250 = vand.u32 2147483647, %v122
    %v251 = vand.u32 2147483647, %v123
    %v252 = vand.u32 2147483647, %v124
    %v253 = vand.u32 2147483647, %v125
    %v254 = vand.u32 2147483647, %v126
    %v255 = vand.u32 2147483647, %v127
    %v256 = vand.u32 2147483647, %v128
    %v257 = vand.u32 2147483647, %v129
    %v258 = vand.u32 2147483647, %v130
    %v259 = vand.u32 2147483647, %v131
    %v260 = vand.u32 2147483647, %v132
    %v261 = vand.u32 2147483647, %v133
    %v262 = vand.u32 2147483647, %v134
    %v263 = vand.u32 2147483647, %v135
    %v264 = vand.u32 2147483647, %v136
    %v265 = vand.u32 2147483647, %v137
    %v266 = vand.u32 2147483647, %v138
    %v267 = vand.u32 2147483647, %v139
    %v268 = vand.u32 2147483647, %v140
    %v269 = vand.u32 2147483647, %v141
    %v270 = vand.u32 2147483647, %v142
    %v271 = vand.u32 2147483647, %v143
    %v272 = vand.u32 2147483647, %v144
    %v273 = vand.u32 2147483647, %v145
    %v274 = vand.u32 2147483647, %v146
    %v275 = vand.u32 2147483647, %v147
    %v276 = vand.u32 2147483647, %v148
    %v277 = vand.u32 2147483647, %v149
    %v278 = vand.u32 2147483647, %v150
    %v279 = vand.u32 2147483647, %v151
    %v280 = vand.u32 2147483647, %v152
    %v281 = vand.u32 2147483647, %v153
    %v282 = vand.u32 2147483647, %v154
    %v283 = vand.u32 2147483647, %v155
    %v284 = vand.u32 2147483647, %v156
    %v285 = vand.u32 2147483647, %v157
    %v286 = vand.u32 2147483647, %v158
    %v287 = vand.u32 2147483647, %v159
    %v288 = vand.u32 2147483647, %v160
    %v289 = vand.u32 2147483647, %v161
    %v290 = vand.u32 2147483647, %v162
    %v291 = vand.u32 2147483647, %v163
    %v292 = vand.u32 2147483647, %v164
    %v293 = vand.u32 2147483647, %v165
    %v294 = vand.u32 2147483647, %v166
    %v295 = vand.u32 2147483647, %v167
    %v296 = vand.u32 2147483647, %v168
    %v297 = vand.u32 2147483647, %v169
    %v298 = vand.u32 2147483647, %v170
    %v299 = vand.u32 2147483647, %v171
    %v300 = vand.u32 2147483647, %v172
    %v301 = vand.u32 2147483647, %v173
    %v302 = vand.u32 2147483647, %v174
    %v303 = vand.u32 2147483647, %v175
    %v304 = vand.u32 2147483647, %v176
    %v305 = vand.u32 2147483647, %v177
    %v306 = vand.u32 2147483647, %v178
    %v307 = vand.u32 2147483647, %v179
    %v308 = vand.u32 2147483647, %v180
    %v309 = vand.u32 2147483647, %v181
    %v310 = vand.u32 2147483647, %v182
    %311 = vmatprep.subr.mxu0 0.0
    %312 = vmatpush1.msra.mxu0 %v198
    %313 = vmatprep.subr.mxu0 0.0
    %314 = vmatpush1.msra.mxu0 %v197
    %315 = vmatprep.subr.mxu0 0.0
    %316 = vmatpush1.msra.mxu0 %v196
    %317 = vmatprep.subr.mxu0 0.0
    %318 = vmatpush1.msra.mxu0 %v195
    %319 = vmatprep.subr.mxu0 0.0
    %320 = vmatpush1.msra.mxu0 %v194
    %321 = vmatprep.subr.mxu0 0.0
    %322 = vmatpush1.msra.mxu0 %v193
    %323 = vmatprep.subr.mxu0 0.0
    %324 = vmatpush1.msra.mxu0 %v192
    %325 = vmatprep.subr.mxu0 0.0
    %326 = vmatpush1.msra.mxu0 %v191
    %327 = vmatprep.subr.mxu0 0.0
    %328 = vmatpush1.msra.mxu0 %v190
    %329 = vmatprep.subr.mxu0 0.0
    %330 = vmatpush1.msra.mxu0 %v189
    %331 = vmatprep.subr.mxu0 0.0
    %332 = vmatpush1.msra.mxu0 %v188
    %333 = vmatprep.subr.mxu0 0.0
    %334 = vmatpush1.msra.mxu0 %v187
    %335 = vmatprep.subr.mxu0 0.0
    %336 = vmatpush1.msra.mxu0 %v186
    %337 = vmatprep.subr.mxu0 0.0
    %338 = vmatpush1.msra.mxu0 %v185
    %339 = vmatprep.subr.mxu0 0.0
    %340 = vmatpush1.msra.mxu0 %v184
    %341 = vmatprep.subr.mxu0 0.0
    %342 = vmatpush1.msra.mxu0 %v183
    %343 = vmatprep.subr.mxu0 0.0
    %344 = vmatpush2.msra.mxu0 0.0
    %345 = vmatprep.subr.mxu0 0.0
    %346 = vmatpush2.msra.mxu0 0.0
    %347 = vmatprep.subr.mxu0 0.0
    %348 = vmatpush2.msra.mxu0 0.0
    %349 = vmatprep.subr.mxu0 0.0
    %350 = vmatpush2.msra.mxu0 0.0
    %351 = vmatprep.subr.mxu0 0.0
    %352 = vmatpush2.msra.mxu0 0.0
    %353 = vmatprep.subr.mxu0 0.0
    %354 = vmatpush2.msra.mxu0 0.0
    %355 = vmatprep.subr.mxu0 0.0
    %356 = vmatpush2.msra.mxu0 0.0
    %357 = vmatprep.subr.mxu0 0.0
    %358 = vmatpush2.msra.mxu0 0.0
    %359 = vmatprep.subr.mxu0 0.0
    %360 = vmatpush2.msra.mxu0 0.0
    %361 = vmatprep.subr.mxu0 0.0
    %362 = vmatpush2.msra.mxu0 0.0
    %363 = vmatprep.subr.mxu0 0.0
    %364 = vmatpush2.msra.mxu0 0.0
    %365 = vmatprep.subr.mxu0 0.0
    %366 = vmatpush2.msra.mxu0 0.0
    %367 = vmatprep.subr.mxu0 0.0
    %368 = vmatpush2.msra.mxu0 0.0
    %369 = vmatprep.subr.mxu0 0.0
    %370 = vmatpush2.msra.mxu0 0.0
    %371 = vmatprep.subr.mxu0 0.0
    %372 = vmatpush2.msra.mxu0 0.0
    %373 = vmatprep.subr.mxu0 0.0
    %374 = vmatpush2.msra.mxu0 0.0
    %375 = vmatprep.mubr.f32.mxu0 0.0
    %376 = vmatmul.mubr.f32.gmra.mxu0 1.0
    %v377 = vpop.f32.mrf.mxu0
    %v378 = vadd.f32 0.0, %v377
    %v379 = vpop.f32.mrf.mxu0
    %380 = vdwg.mxu0
    %381 = vmatprep.subr.mxu0 0.0
    %382 = vmatpush1.msra.mxu0 %v214
    %383 = vmatprep.subr.mxu0 0.0
    %384 = vmatpush1.msra.mxu0 %v213
    %385 = vmatprep.subr.mxu0 0.0
    %386 = vmatpush1.msra.mxu0 %v212
    %387 = vmatprep.subr.mxu0 0.0
    %388 = vmatpush1.msra.mxu0 %v211
    %389 = vmatprep.subr.mxu0 0.0
    %390 = vmatpush1.msra.mxu0 %v210
    %391 = vmatprep.subr.mxu0 0.0
    %392 = vmatpush1.msra.mxu0 %v209
    %393 = vmatprep.subr.mxu0 0.0
    %394 = vmatpush1.msra.mxu0 %v208
    %395 = vmatprep.subr.mxu0 0.0
    %396 = vmatpush1.msra.mxu0 %v207
    %397 = vmatprep.subr.mxu0 0.0
    %398 = vmatpush1.msra.mxu0 %v206
    %399 = vmatprep.subr.mxu0 0.0
    %400 = vmatpush1.msra.mxu0 %v205
    %401 = vmatprep.subr.mxu0 0.0
    %402 = vmatpush1.msra.mxu0 %v204
    %403 = vmatprep.subr.mxu0 0.0
    %404 = vmatpush1.msra.mxu0 %v203
    %405 = vmatprep.subr.mxu0 0.0
    %406 = vmatpush1.msra.mxu0 %v202
    %407 = vmatprep.subr.mxu0 0.0
    %408 = vmatpush1.msra.mxu0 %v201
    %409 = vmatprep.subr.mxu0 0.0
    %410 = vmatpush1.msra.mxu0 %v200
    %411 = vmatprep.subr.mxu0 0.0
    %412 = vmatpush1.msra.mxu0 %v199
    %413 = vmatprep.subr.mxu0 0.0
    %414 = vmatpush2.msra.mxu0 0.0
    %415 = vmatprep.subr.mxu0 0.0
    %416 = vmatpush2.msra.mxu0 0.0
    %417 = vmatprep.subr.mxu0 0.0
    %418 = vmatpush2.msra.mxu0 0.0
    %419 = vmatprep.subr.mxu0 0.0
    %420 = vmatpush2.msra.mxu0 0.0
    %421 = vmatprep.subr.mxu0 0.0
    %422 = vmatpush2.msra.mxu0 0.0
    %423 = vmatprep.subr.mxu0 0.0
    %424 = vmatpush2.msra.mxu0 0.0
    %425 = vmatprep.subr.mxu0 0.0
    %426 = vmatpush2.msra.mxu0 0.0
    %427 = vmatprep.subr.mxu0 0.0
    %428 = vmatpush2.msra.mxu0 0.0
    %429 = vmatprep.subr.mxu0 0.0
    %430 = vmatpush2.msra.mxu0 0.0
    %431 = vmatprep.subr.mxu0 0.0
    %432 = vmatpush2.msra.mxu0 0.0
    %433 = vmatprep.subr.mxu0 0.0
    %434 = vmatpush2.msra.mxu0 0.0
    %435 = vmatprep.subr.mxu0 0.0
    %436 = vmatpush2.msra.mxu0 0.0
    %437 = vmatprep.subr.mxu0 0.0
    %438 = vmatpush2.msra.mxu0 0.0
    %439 = vmatprep.subr.mxu0 0.0
    %440 = vmatpush2.msra.mxu0 0.0
    %441 = vmatprep.subr.mxu0 0.0
    %442 = vmatpush2.msra.mxu0 0.0
    %443 = vmatprep.subr.mxu0 0.0
    %444 = vmatpush2.msra.mxu0 0.0
    %445 = vmatprep.mubr.f32.mxu0 0.0
    %446 = vmatmul.mubr.f32.gmra.mxu0 1.0
    %v447 = vpop.f32.mrf.mxu0
    %v448 = vadd.f32 0.0, %v447
    %v449 = vpop.f32.mrf.mxu0
    %450 = vdwg.mxu0
    %451 = vmatprep.subr.mxu0 0.0
    %452 = vmatpush1.msra.mxu0 %v230
    %453 = vmatprep.subr.mxu0 0.0
    %454 = vmatpush1.msra.mxu0 %v229
    %455 = vmatprep.subr.mxu0 0.0
    %456 = vmatpush1.msra.mxu0 %v228
    %457 = vmatprep.subr.mxu0 0.0
    %458 = vmatpush1.msra.mxu0 %v227
    %459 = vmatprep.subr.mxu0 0.0
    %460 = vmatpush1.msra.mxu0 %v226
    %461 = vmatprep.subr.mxu0 0.0
    %462 = vmatpush1.msra.mxu0 %v225
    %463 = vmatprep.subr.mxu0 0.0
    %464 = vmatpush1.msra.mxu0 %v224
    %465 = vmatprep.subr.mxu0 0.0
    %466 = vmatpush1.msra.mxu0 %v223
    %467 = vmatprep.subr.mxu0 0.0
    %468 = vmatpush1.msra.mxu0 %v222
    %469 = vmatprep.subr.mxu0 0.0
    %470 = vmatpush1.msra.mxu0 %v221
    %471 = vmatprep.subr.mxu0 0.0
    %472 = vmatpush1.msra.mxu0 %v220
    %473 = vmatprep.subr.mxu0 0.0
    %474 = vmatpush1.msra.mxu0 %v219
    %475 = vmatprep.subr.mxu0 0.0
    %476 = vmatpush1.msra.mxu0 %v218
    %477 = vmatprep.subr.mxu0 0.0
    %478 = vmatpush1.msra.mxu0 %v217
    %479 = vmatprep.subr.mxu0 0.0
    %480 = vmatpush1.msra.mxu0 %v216
    %481 = vmatprep.subr.mxu0 0.0
    %482 = vmatpush1.msra.mxu0 %v215
    %483 = vmatprep.subr.mxu0 0.0
    %484 = vmatpush2.msra.mxu0 0.0
    %485 = vmatprep.subr.mxu0 0.0
    %486 = vmatpush2.msra.mxu0 0.0
    %487 = vmatprep.subr.mxu0 0.0
    %488 = vmatpush2.msra.mxu0 0.0
    %489 = vmatprep.subr.mxu0 0.0
    %490 = vmatpush2.msra.mxu0 0.0
    %491 = vmatprep.subr.mxu0 0.0
    %492 = vmatpush2.msra.mxu0 0.0
    %493 = vmatprep.subr.mxu0 0.0
    %494 = vmatpush2.msra.mxu0 0.0
    %495 = vmatprep.subr.mxu0 0.0
    %496 = vmatpush2.msra.mxu0 0.0
    %497 = vmatprep.subr.mxu0 0.0
    %498 = vmatpush2.msra.mxu0 0.0
    %499 = vmatprep.subr.mxu0 0.0
    %500 = vmatpush2.msra.mxu0 0.0
    %501 = vmatprep.subr.mxu0 0.0
    %502 = vmatpush2.msra.mxu0 0.0
    %503 = vmatprep.subr.mxu0 0.0
    %504 = vmatpush2.msra.mxu0 0.0
    %505 = vmatprep.subr.mxu0 0.0
    %506 = vmatpush2.msra.mxu0 0.0
    %507 = vmatprep.subr.mxu0 0.0
    %508 = vmatpush2.msra.mxu0 0.0
    %509 = vmatprep.subr.mxu0 0.0
    %510 = vmatpush2.msra.mxu0 0.0
    %511 = vmatprep.subr.mxu0 0.0
    %512 = vmatpush2.msra.mxu0 0.0
    %513 = vmatprep.subr.mxu0 0.0
    %514 = vmatpush2.msra.mxu0 0.0
    %515 = vmatprep.mubr.f32.mxu0 0.0
    %516 = vmatmul.mubr.f32.gmra.mxu0 1.0
    %v517 = vpop.f32.mrf.mxu0
    %v518 = vadd.f32 0.0, %v517
    %v519 = vpop.f32.mrf.mxu0
    %520 = vdwg.mxu0
    %521 = vmatprep.subr.mxu0 0.0
    %522 = vmatpush1.msra.mxu0 %v246
    %523 = vmatprep.subr.mxu0 0.0
    %524 = vmatpush1.msra.mxu0 %v245
    %525 = vmatprep.subr.mxu0 0.0
    %526 = vmatpush1.msra.mxu0 %v244
    %527 = vmatprep.subr.mxu0 0.0
    %528 = vmatpush1.msra.mxu0 %v243
    %529 = vmatprep.subr.mxu0 0.0
    %530 = vmatpush1.msra.mxu0 %v242
    %531 = vmatprep.subr.mxu0 0.0
    %532 = vmatpush1.msra.mxu0 %v241
    %533 = vmatprep.subr.mxu0 0.0
    %534 = vmatpush1.msra.mxu0 %v240
    %535 = vmatprep.subr.mxu0 0.0
    %536 = vmatpush1.msra.mxu0 %v239
    %537 = vmatprep.subr.mxu0 0.0
    %538 = vmatpush1.msra.mxu0 %v238
    %539 = vmatprep.subr.mxu0 0.0
    %540 = vmatpush1.msra.mxu0 %v237
    %541 = vmatprep.subr.mxu0 0.0
    %542 = vmatpush1.msra.mxu0 %v236
    %543 = vmatprep.subr.mxu0 0.0
    %544 = vmatpush1.msra.mxu0 %v235
    %545 = vmatprep.subr.mxu0 0.0
    %546 = vmatpush1.msra.mxu0 %v234
    %547 = vmatprep.subr.mxu0 0.0
    %548 = vmatpush1.msra.mxu0 %v233
    %549 = vmatprep.subr.mxu0 0.0
    %550 = vmatpush1.msra.mxu0 %v232
    %551 = vmatprep.subr.mxu0 0.0
    %552 = vmatpush1.msra.mxu0 %v231
    %553 = vmatprep.subr.mxu0 0.0
    %554 = vmatpush2.msra.mxu0 0.0
    %555 = vmatprep.subr.mxu0 0.0
    %556 = vmatpush2.msra.mxu0 0.0
    %557 = vmatprep.subr.mxu0 0.0
    %558 = vmatpush2.msra.mxu0 0.0
    %559 = vmatprep.subr.mxu0 0.0
    %560 = vmatpush2.msra.mxu0 0.0
    %561 = vmatprep.subr.mxu0 0.0
    %562 = vmatpush2.msra.mxu0 0.0
    %563 = vmatprep.subr.mxu0 0.0
    %564 = vmatpush2.msra.mxu0 0.0
    %565 = vmatprep.subr.mxu0 0.0
    %566 = vmatpush2.msra.mxu0 0.0
    %567 = vmatprep.subr.mxu0 0.0
    %568 = vmatpush2.msra.mxu0 0.0
    %569 = vmatprep.subr.mxu0 0.0
    %570 = vmatpush2.msra.mxu0 0.0
    %571 = vmatprep.subr.mxu0 0.0
    %572 = vmatpush2.msra.mxu0 0.0
    %573 = vmatprep.subr.mxu0 0.0
    %574 = vmatpush2.msra.mxu0 0.0
    %575 = vmatprep.subr.mxu0 0.0
    %576 = vmatpush2.msra.mxu0 0.0
    %577 = vmatprep.subr.mxu0 0.0
    %578 = vmatpush2.msra.mxu0 0.0
    %579 = vmatprep.subr.mxu0 0.0
    %580 = vmatpush2.msra.mxu0 0.0
    %581 = vmatprep.subr.mxu0 0.0
    %582 = vmatpush2.msra.mxu0 0.0
    %583 = vmatprep.subr.mxu0 0.0
    %584 = vmatpush2.msra.mxu0 0.0
    %585 = vmatprep.mubr.f32.mxu0 0.0
    %586 = vmatmul.mubr.f32.gmra.mxu0 1.0
    %v587 = vpop.f32.mrf.mxu0
    %v588 = vadd.f32 0.0, %v587
    %v589 = vpop.f32.mrf.mxu0
    %590 = vdwg.mxu0
    %591 = vmatprep.subr.mxu0 0.0
    %592 = vmatpush1.msra.mxu0 %v262
    %593 = vmatprep.subr.mxu0 0.0
    %594 = vmatpush1.msra.mxu0 %v261
    %595 = vmatprep.subr.mxu0 0.0
    %596 = vmatpush1.msra.mxu0 %v260
    %597 = vmatprep.subr.mxu0 0.0
    %598 = vmatpush1.msra.mxu0 %v259
    %599 = vmatprep.subr.mxu0 0.0
    %600 = vmatpush1.msra.mxu0 %v258
    %601 = vmatprep.subr.mxu0 0.0
    %602 = vmatpush1.msra.mxu0 %v257
    %603 = vmatprep.subr.mxu0 0.0
    %604 = vmatpush1.msra.mxu0 %v256
    %605 = vmatprep.subr.mxu0 0.0
    %606 = vmatpush1.msra.mxu0 %v255
    %607 = vmatprep.subr.mxu0 0.0
    %608 = vmatpush1.msra.mxu0 %v254
    %609 = vmatprep.subr.mxu0 0.0
    %610 = vmatpush1.msra.mxu0 %v253
    %611 = vmatprep.subr.mxu0 0.0
    %612 = vmatpush1.msra.mxu0 %v252
    %613 = vmatprep.subr.mxu0 0.0
    %614 = vmatpush1.msra.mxu0 %v251
    %615 = vmatprep.subr.mxu0 0.0
    %616 = vmatpush1.msra.mxu0 %v250
    %617 = vmatprep.subr.mxu0 0.0
    %618 = vmatpush1.msra.mxu0 %v249
    %619 = vmatprep.subr.mxu0 0.0
    %620 = vmatpush1.msra.mxu0 %v248
    %621 = vmatprep.subr.mxu0 0.0
    %622 = vmatpush1.msra.mxu0 %v247
    %623 = vmatprep.subr.mxu0 0.0
    %624 = vmatpush2.msra.mxu0 0.0
    %625 = vmatprep.subr.mxu0 0.0
    %626 = vmatpush2.msra.mxu0 0.0
    %627 = vmatprep.subr.mxu0 0.0
    %628 = vmatpush2.msra.mxu0 0.0
    %629 = vmatprep.subr.mxu0 0.0
    %630 = vmatpush2.msra.mxu0 0.0
    %631 = vmatprep.subr.mxu0 0.0
    %632 = vmatpush2.msra.mxu0 0.0
    %633 = vmatprep.subr.mxu0 0.0
    %634 = vmatpush2.msra.mxu0 0.0
    %635 = vmatprep.subr.mxu0 0.0
    %636 = vmatpush2.msra.mxu0 0.0
    %637 = vmatprep.subr.mxu0 0.0
    %638 = vmatpush2.msra.mxu0 0.0
    %639 = vmatprep.subr.mxu0 0.0
    %640 = vmatpush2.msra.mxu0 0.0
    %641 = vmatprep.subr.mxu0 0.0
    %642 = vmatpush2.msra.mxu0 0.0
    %643 = vmatprep.subr.mxu0 0.0
    %644 = vmatpush2.msra.mxu0 0.0
    %645 = vmatprep.subr.mxu0 0.0
    %646 = vmatpush2.msra.mxu0 0.0
    %647 = vmatprep.subr.mxu0 0.0
    %648 = vmatpush2.msra.mxu0 0.0
    %649 = vmatprep.subr.mxu0 0.0
    %650 = vmatpush2.msra.mxu0 0.0
    %651 = vmatprep.subr.mxu0 0.0
    %652 = vmatpush2.msra.mxu0 0.0
    %653 = vmatprep.subr.mxu0 0.0
    %654 = vmatpush2.msra.mxu0 0.0
    %655 = vmatprep.mubr.f32.mxu0 0.0
    %656 = vmatmul.mubr.f32.gmra.mxu0 1.0
    %v657 = vpop.f32.mrf.mxu0
    %v658 = vadd.f32 0.0, %v657
    %v659 = vpop.f32.mrf.mxu0
    %660 = vdwg.mxu0
    %661 = vmatprep.subr.mxu0 0.0
    %662 = vmatpush1.msra.mxu0 %v278
    %663 = vmatprep.subr.mxu0 0.0
    %664 = vmatpush1.msra.mxu0 %v277
    %665 = vmatprep.subr.mxu0 0.0
    %666 = vmatpush1.msra.mxu0 %v276
    %667 = vmatprep.subr.mxu0 0.0
    %668 = vmatpush1.msra.mxu0 %v275
    %669 = vmatprep.subr.mxu0 0.0
    %670 = vmatpush1.msra.mxu0 %v274
    %671 = vmatprep.subr.mxu0 0.0
    %672 = vmatpush1.msra.mxu0 %v273
    %673 = vmatprep.subr.mxu0 0.0
    %674 = vmatpush1.msra.mxu0 %v272
    %675 = vmatprep.subr.mxu0 0.0
    %676 = vmatpush1.msra.mxu0 %v271
    %677 = vmatprep.subr.mxu0 0.0
    %678 = vmatpush1.msra.mxu0 %v270
    %679 = vmatprep.subr.mxu0 0.0
    %680 = vmatpush1.msra.mxu0 %v269
    %681 = vmatprep.subr.mxu0 0.0
    %682 = vmatpush1.msra.mxu0 %v268
    %683 = vmatprep.subr.mxu0 0.0
    %684 = vmatpush1.msra.mxu0 %v267
    %685 = vmatprep.subr.mxu0 0.0
    %686 = vmatpush1.msra.mxu0 %v266
    %687 = vmatprep.subr.mxu0 0.0
    %688 = vmatpush1.msra.mxu0 %v265
    %689 = vmatprep.subr.mxu0 0.0
    %690 = vmatpush1.msra.mxu0 %v264
    %691 = vmatprep.subr.mxu0 0.0
    %692 = vmatpush1.msra.mxu0 %v263
    %693 = vmatprep.subr.mxu0 0.0
    %694 = vmatpush2.msra.mxu0 0.0
    %695 = vmatprep.subr.mxu0 0.0
    %696 = vmatpush2.msra.mxu0 0.0
    %697 = vmatprep.subr.mxu0 0.0
    %698 = vmatpush2.msra.mxu0 0.0
    %699 = vmatprep.subr.mxu0 0.0
    %700 = vmatpush2.msra.mxu0 0.0
    %701 = vmatprep.subr.mxu0 0.0
    %702 = vmatpush2.msra.mxu0 0.0
    %703 = vmatprep.subr.mxu0 0.0
    %704 = vmatpush2.msra.mxu0 0.0
    %705 = vmatprep.subr.mxu0 0.0
    %706 = vmatpush2.msra.mxu0 0.0
    %707 = vmatprep.subr.mxu0 0.0
    %708 = vmatpush2.msra.mxu0 0.0
    %709 = vmatprep.subr.mxu0 0.0
    %710 = vmatpush2.msra.mxu0 0.0
    %711 = vmatprep.subr.mxu0 0.0
    %712 = vmatpush2.msra.mxu0 0.0
    %713 = vmatprep.subr.mxu0 0.0
    %714 = vmatpush2.msra.mxu0 0.0
    %715 = vmatprep.subr.mxu0 0.0
    %716 = vmatpush2.msra.mxu0 0.0
    %717 = vmatprep.subr.mxu0 0.0
    %718 = vmatpush2.msra.mxu0 0.0
    %719 = vmatprep.subr.mxu0 0.0
    %720 = vmatpush2.msra.mxu0 0.0
    %721 = vmatprep.subr.mxu0 0.0
    %722 = vmatpush2.msra.mxu0 0.0
    %723 = vmatprep.subr.mxu0 0.0
    %724 = vmatpush2.msra.mxu0 0.0
    %725 = vmatprep.mubr.f32.mxu0 0.0
    %726 = vmatmul.mubr.f32.gmra.mxu0 1.0
    %v727 = vpop.f32.mrf.mxu0
    %v728 = vadd.f32 0.0, %v727
    %v729 = vpop.f32.mrf.mxu0
    %730 = vdwg.mxu0
    %731 = vmatprep.subr.mxu0 0.0
    %732 = vmatpush1.msra.mxu0 %v294
    %733 = vmatprep.subr.mxu0 0.0
    %734 = vmatpush1.msra.mxu0 %v293
    %735 = vmatprep.subr.mxu0 0.0
    %736 = vmatpush1.msra.mxu0 %v292
    %737 = vmatprep.subr.mxu0 0.0
    %738 = vmatpush1.msra.mxu0 %v291
    %739 = vmatprep.subr.mxu0 0.0
    %740 = vmatpush1.msra.mxu0 %v290
    %741 = vmatprep.subr.mxu0 0.0
    %742 = vmatpush1.msra.mxu0 %v289
    %743 = vmatprep.subr.mxu0 0.0
    %744 = vmatpush1.msra.mxu0 %v288
    %745 = vmatprep.subr.mxu0 0.0
    %746 = vmatpush1.msra.mxu0 %v287
    %747 = vmatprep.subr.mxu0 0.0
    %748 = vmatpush1.msra.mxu0 %v286
    %749 = vmatprep.subr.mxu0 0.0
    %750 = vmatpush1.msra.mxu0 %v285
    %751 = vmatprep.subr.mxu0 0.0
    %752 = vmatpush1.msra.mxu0 %v284
    %753 = vmatprep.subr.mxu0 0.0
    %754 = vmatpush1.msra.mxu0 %v283
    %755 = vmatprep.subr.mxu0 0.0
    %756 = vmatpush1.msra.mxu0 %v282
    %757 = vmatprep.subr.mxu0 0.0
    %758 = vmatpush1.msra.mxu0 %v281
    %759 = vmatprep.subr.mxu0 0.0
    %760 = vmatpush1.msra.mxu0 %v280
    %761 = vmatprep.subr.mxu0 0.0
    %762 = vmatpush1.msra.mxu0 %v279
    %763 = vmatprep.subr.mxu0 0.0
    %764 = vmatpush2.msra.mxu0 0.0
    %765 = vmatprep.subr.mxu0 0.0
    %766 = vmatpush2.msra.mxu0 0.0
    %767 = vmatprep.subr.mxu0 0.0
    %768 = vmatpush2.msra.mxu0 0.0
    %769 = vmatprep.subr.mxu0 0.0
    %770 = vmatpush2.msra.mxu0 0.0
    %771 = vmatprep.subr.mxu0 0.0
    %772 = vmatpush2.msra.mxu0 0.0
    %773 = vmatprep.subr.mxu0 0.0
    %774 = vmatpush2.msra.mxu0 0.0
    %775 = vmatprep.subr.mxu0 0.0
    %776 = vmatpush2.msra.mxu0 0.0
    %777 = vmatprep.subr.mxu0 0.0
    %778 = vmatpush2.msra.mxu0 0.0
    %779 = vmatprep.subr.mxu0 0.0
    %780 = vmatpush2.msra.mxu0 0.0
    %781 = vmatprep.subr.mxu0 0.0
    %782 = vmatpush2.msra.mxu0 0.0
    %783 = vmatprep.subr.mxu0 0.0
    %784 = vmatpush2.msra.mxu0 0.0
    %785 = vmatprep.subr.mxu0 0.0
    %786 = vmatpush2.msra.mxu0 0.0
    %787 = vmatprep.subr.mxu0 0.0
    %788 = vmatpush2.msra.mxu0 0.0
    %789 = vmatprep.subr.mxu0 0.0
    %790 = vmatpush2.msra.mxu0 0.0
    %791 = vmatprep.subr.mxu0 0.0
    %792 = vmatpush2.msra.mxu0 0.0
    %793 = vmatprep.subr.mxu0 0.0
    %794 = vmatpush2.msra.mxu0 0.0
    %795 = vmatprep.mubr.f32.mxu0 0.0
    %796 = vmatmul.mubr.f32.gmra.mxu0 1.0
    %v797 = vpop.f32.mrf.mxu0
    %v798 = vadd.f32 0.0, %v797
    %v799 = vpop.f32.mrf.mxu0
    %800 = vdwg.mxu0
    %801 = vmatprep.subr.mxu0 0.0
    %802 = vmatpush1.msra.mxu0 %v310
    %803 = vmatprep.subr.mxu0 0.0
    %804 = vmatpush1.msra.mxu0 %v309
    %805 = vmatprep.subr.mxu0 0.0
    %806 = vmatpush1.msra.mxu0 %v308
    %807 = vmatprep.subr.mxu0 0.0
    %808 = vmatpush1.msra.mxu0 %v307
    %809 = vmatprep.subr.mxu0 0.0
    %810 = vmatpush1.msra.mxu0 %v306
    %811 = vmatprep.subr.mxu0 0.0
    %812 = vmatpush1.msra.mxu0 %v305
    %813 = vmatprep.subr.mxu0 0.0
    %814 = vmatpush1.msra.mxu0 %v304
    %815 = vmatprep.subr.mxu0 0.0
    %816 = vmatpush1.msra.mxu0 %v303
    %817 = vmatprep.subr.mxu0 0.0
    %818 = vmatpush1.msra.mxu0 %v302
    %819 = vmatprep.subr.mxu0 0.0
    %820 = vmatpush1.msra.mxu0 %v301
    %821 = vmatprep.subr.mxu0 0.0
    %822 = vmatpush1.msra.mxu0 %v300
    %823 = vmatprep.subr.mxu0 0.0
    %824 = vmatpush1.msra.mxu0 %v299
    %825 = vmatprep.subr.mxu0 0.0
    %826 = vmatpush1.msra.mxu0 %v298
    %827 = vmatprep.subr.mxu0 0.0
    %828 = vmatpush1.msra.mxu0 %v297
    %829 = vmatprep.subr.mxu0 0.0
    %830 = vmatpush1.msra.mxu0 %v296
    %831 = vmatprep.subr.mxu0 0.0
    %832 = vmatpush1.msra.mxu0 %v295
    %833 = vmatprep.subr.mxu0 0.0
    %834 = vmatpush2.msra.mxu0 0.0
    %835 = vmatprep.subr.mxu0 0.0
    %836 = vmatpush2.msra.mxu0 0.0
    %837 = vmatprep.subr.mxu0 0.0
    %838 = vmatpush2.msra.mxu0 0.0
    %839 = vmatprep.subr.mxu0 0.0
    %840 = vmatpush2.msra.mxu0 0.0
    %841 = vmatprep.subr.mxu0 0.0
    %842 = vmatpush2.msra.mxu0 0.0
    %843 = vmatprep.subr.mxu0 0.0
    %844 = vmatpush2.msra.mxu0 0.0
    %845 = vmatprep.subr.mxu0 0.0
    %846 = vmatpush2.msra.mxu0 0.0
    %847 = vmatprep.subr.mxu0 0.0
    %848 = vmatpush2.msra.mxu0 0.0
    %849 = vmatprep.subr.mxu0 0.0
    %850 = vmatpush2.msra.mxu0 0.0
    %851 = vmatprep.subr.mxu0 0.0
    %852 = vmatpush2.msra.mxu0 0.0
    %853 = vmatprep.subr.mxu0 0.0
    %854 = vmatpush2.msra.mxu0 0.0
    %855 = vmatprep.subr.mxu0 0.0
    %856 = vmatpush2.msra.mxu0 0.0
    %857 = vmatprep.subr.mxu0 0.0
    %858 = vmatpush2.msra.mxu0 0.0
    %859 = vmatprep.subr.mxu0 0.0
    %860 = vmatpush2.msra.mxu0 0.0
    %861 = vmatprep.subr.mxu0 0.0
    %862 = vmatpush2.msra.mxu0 0.0
    %863 = vmatprep.subr.mxu0 0.0
    %864 = vmatpush2.msra.mxu0 0.0
    %865 = vmatprep.mubr.f32.mxu0 0.0
    %866 = vmatmul.mubr.f32.gmra.mxu0 1.0
    %v867 = vpop.f32.mrf.mxu0
    %v868 = vadd.f32 0.0, %v867
    %v869 = vpop.f32.mrf.mxu0
    %870 = vdwg.mxu0
    %vm871 = vcmask 1040384
    %v872 = vsel %vm871, %v378, -inf
    %873 = vmax.xlane.f32.xlu0 %v872
    %v874 = vpop.xlane.xlu0 %873
    %v875 = vsel %vm871, %v448, -inf
    %876 = vmax.xlane.f32.xlu0 %v875
    %v877 = vpop.xlane.xlu0 %876
    %v878 = vsel %vm871, %v518, -inf
    %879 = vmax.xlane.f32.xlu0 %v878
    %v880 = vpop.xlane.xlu0 %879
    %v881 = vsel %vm871, %v588, -inf
    %882 = vmax.xlane.f32.xlu0 %v881
    %v883 = vpop.xlane.xlu0 %882
    %v884 = vsel %vm871, %v658, -inf
    %885 = vmax.xlane.f32.xlu0 %v884
    %v886 = vpop.xlane.xlu0 %885
    %v887 = vsel %vm871, %v728, -inf
    %888 = vmax.xlane.f32.xlu0 %v887
    %v889 = vpop.xlane.xlu0 %888
    %v890 = vsel %vm871, %v798, -inf
    %891 = vmax.xlane.f32.xlu0 %v890
    %v892 = vpop.xlane.xlu0 %891
    %v893 = vsel %vm871, %v868, -inf
    %894 = vmax.xlane.f32.xlu0 %v893
    %v895 = vpop.xlane.xlu0 %894
    %v896 = vsub.f32 %v378, %v874
    %v897 = vsub.f32 %v448, %v877
    %v898 = vsub.f32 %v518, %v880
    %v899 = vsub.f32 %v588, %v883
    %v900 = vsub.f32 %v658, %v886
    %v901 = vsub.f32 %v728, %v889
    %v902 = vsub.f32 %v798, %v892
    %v903 = vsub.f32 %v868, %v895
    %v904 = vmul.f32 %v896, 1.6666666
    %v905 = vmul.f32 %v897, 1.6666666
    %v906 = vmul.f32 %v898, 1.6666666
    %v907 = vmul.f32 %v899, 1.6666666
    %v908 = vmul.f32 %v900, 1.6666666
    %v909 = vmul.f32 %v901, 1.6666666
    %v910 = vmul.f32 %v902, 1.6666666
    %v911 = vmul.f32 %v903, 1.6666666
    %v912 = vmul.f32 %v904, 1.442695
    %v913 = vpow.pop %v912
    %v914 = vmul.f32 %v905, 1.442695
    %v915 = vpow.pop %v914
    %v916 = vmul.f32 %v906, 1.442695
    %v917 = vpow.pop %v916
    %v918 = vmul.f32 %v907, 1.442695
    %v919 = vpow.pop %v918
    %v920 = vmul.f32 %v908, 1.442695
    %v921 = vpow.pop %v920
    %v922 = vmul.f32 %v909, 1.442695
    %v923 = vpow.pop %v922
    %v924 = vmul.f32 %v910, 1.442695
    %v925 = vpow.pop %v924
    %v926 = vmul.f32 %v911, 1.442695
    %v927 = vpow.pop %v926
    %v928 = vlaneseq
    %v929 = vshrl.u32 %v928, 7
    %v930 = vsub.s32 0, %v929
    %v931 = vrot.slane %v913, %v930
    %v932 = vlaneseq
    %v933 = vshrl.u32 %v932, 7
    %v934 = vsub.s32 0, %v933
    %v935 = vrot.slane %v915, %v934
    %v936 = vlaneseq
    %v937 = vshrl.u32 %v936, 7
    %v938 = vsub.s32 0, %v937
    %v939 = vrot.slane %v917, %v938
    %v940 = vlaneseq
    %v941 = vshrl.u32 %v940, 7
    %v942 = vsub.s32 0, %v941
    %v943 = vrot.slane %v919, %v942
    %v944 = vlaneseq
    %v945 = vshrl.u32 %v944, 7
    %v946 = vsub.s32 0, %v945
    %v947 = vrot.slane %v921, %v946
    %v948 = vlaneseq
    %v949 = vshrl.u32 %v948, 7
    %v950 = vsub.s32 0, %v949
    %v951 = vrot.slane %v923, %v950
    %v952 = vlaneseq
    %v953 = vshrl.u32 %v952, 7
    %v954 = vsub.s32 0, %v953
    %v955 = vrot.slane %v925, %v954
    %v956 = vlaneseq
    %v957 = vshrl.u32 %v956, 7
    %v958 = vsub.s32 0, %v957
    %v959 = vrot.slane %v927, %v958
    %v960 = vmul.f32 %v54, %v931
    %v961 = vmul.f32 %v54, %v935
    %v962 = vmul.f32 %v54, %v939
    %v963 = vmul.f32 %v54, %v943
    %v964 = vmul.f32 %v54, %v947
    %v965 = vmul.f32 %v54, %v951
    %v966 = vmul.f32 %v54, %v955
    %v967 = vmul.f32 %v54, %v959
    %v968 = vld [vmem:[#allocation7] sm:$0x1]
    %v969 = vld [vmem:[#allocation7 + $0x1] sm:$0x1]
    %v970 = vld [vmem:[#allocation7 + $0x2] sm:$0x1]
    %v971 = vld [vmem:[#allocation7 + $0x3] sm:$0x1]
    %v972 = vld [vmem:[#allocation7 + $0x4] sm:$0x1]
    %v973 = vld [vmem:[#allocation7 + $0x5] sm:$0x1]
    %v974 = vld [vmem:[#allocation7 + $0x6] sm:$0x1]
    %v975 = vld [vmem:[#allocation7 + $0x7] sm:$0x1]
    %v984 = vlaneseq
    %v985 = vshrl.u32 %v984, 7
    %v986 = vsub.s32 0, %v985
    %v987 = vrot.slane %v968, %v986
    %v988 = vlaneseq
    %v989 = vshrl.u32 %v988, 7
    %v990 = vsub.s32 0, %v989
    %v991 = vrot.slane %v969, %v990
    %v992 = vlaneseq
    %v993 = vshrl.u32 %v992, 7
    %v994 = vsub.s32 0, %v993
    %v995 = vrot.slane %v970, %v994
    %v996 = vlaneseq
    %v997 = vshrl.u32 %v996, 7
    %v998 = vsub.s32 0, %v997
    %v999 = vrot.slane %v971, %v998
    %v1000 = vlaneseq
    %v1001 = vshrl.u32 %v1000, 7
    %v1002 = vsub.s32 0, %v1001
    %v1003 = vrot.slane %v972, %v1002
    %v1004 = vlaneseq
    %v1005 = vshrl.u32 %v1004, 7
    %v1006 = vsub.s32 0, %v1005
    %v1007 = vrot.slane %v973, %v1006
    %v1008 = vlaneseq
    %v1009 = vshrl.u32 %v1008, 7
    %v1010 = vsub.s32 0, %v1009
    %v1011 = vrot.slane %v974, %v1010
    %v1012 = vlaneseq
    %v1013 = vshrl.u32 %v1012, 7
    %v1014 = vsub.s32 0, %v1013
    %v1015 = vrot.slane %v975, %v1014
    %1024 = vmatprep.subr.mxu0 0.0
    %1025 = vmatpush1.xpose.msra.mxu0 %v70
    %1026 = vmatprep.subr.mxu0 0.0
    %1027 = vmatpush1.xpose.msra.mxu0 %v69
    %1028 = vmatprep.subr.mxu0 0.0
    %1029 = vmatpush1.xpose.msra.mxu0 %v68
    %1030 = vmatprep.subr.mxu0 0.0
    %1031 = vmatpush1.xpose.msra.mxu0 %v67
    %1032 = vmatprep.subr.mxu0 0.0
    %1033 = vmatpush1.xpose.msra.mxu0 %v66
    %1034 = vmatprep.subr.mxu0 0.0
    %1035 = vmatpush1.xpose.msra.mxu0 %v65
    %1036 = vmatprep.subr.mxu0 0.0
    %1037 = vmatpush1.xpose.msra.mxu0 %v64
    %1038 = vmatprep.subr.mxu0 0.0
    %1039 = vmatpush1.xpose.msra.mxu0 %v63
    %1040 = vmatprep.subr.mxu0 0.0
    %1041 = vmatpush1.xpose.msra.mxu0 %v62
    %1042 = vmatprep.subr.mxu0 0.0
    %1043 = vmatpush1.xpose.msra.mxu0 %v61
    %1044 = vmatprep.subr.mxu0 0.0
    %1045 = vmatpush1.xpose.msra.mxu0 %v60
    %1046 = vmatprep.subr.mxu0 0.0
    %1047 = vmatpush1.xpose.msra.mxu0 %v59
    %1048 = vmatprep.subr.mxu0 0.0
    %1049 = vmatpush1.xpose.msra.mxu0 %v58
    %1050 = vmatprep.subr.mxu0 0.0
    %1051 = vmatpush1.xpose.msra.mxu0 %v57
    %1052 = vmatprep.subr.mxu0 0.0
    %1053 = vmatpush1.xpose.msra.mxu0 %v56
    %1054 = vmatprep.subr.mxu0 0.0
    %1055 = vmatpush1.xpose.msra.mxu0 %v55
    %1056 = vmatprep.subr.mxu0 0.0
    %1057 = vmatpush2.xpose.msra.mxu0 0.0
    %1058 = vmatprep.subr.mxu0 0.0
    %1059 = vmatpush2.xpose.msra.mxu0 0.0
    %1060 = vmatprep.subr.mxu0 0.0
    %1061 = vmatpush2.xpose.msra.mxu0 0.0
    %1062 = vmatprep.subr.mxu0 0.0
    %1063 = vmatpush2.xpose.msra.mxu0 0.0
    %1064 = vmatprep.subr.mxu0 0.0
    %1065 = vmatpush2.xpose.msra.mxu0 0.0
    %1066 = vmatprep.subr.mxu0 0.0
    %1067 = vmatpush2.xpose.msra.mxu0 0.0
    %1068 = vmatprep.subr.mxu0 0.0
    %1069 = vmatpush2.xpose.msra.mxu0 0.0
    %1070 = vmatprep.subr.mxu0 0.0
    %1071 = vmatpush2.xpose.msra.mxu0 0.0
    %1072 = vmatprep.subr.mxu0 0.0
    %1073 = vmatpush2.xpose.msra.mxu0 0.0
    %1074 = vmatprep.subr.mxu0 0.0
    %1075 = vmatpush2.xpose.msra.mxu0 0.0
    %1076 = vmatprep.subr.mxu0 0.0
    %1077 = vmatpush2.xpose.msra.mxu0 0.0
    %1078 = vmatprep.subr.mxu0 0.0
    %1079 = vmatpush2.xpose.msra.mxu0 0.0
    %1080 = vmatprep.subr.mxu0 0.0
    %1081 = vmatpush2.xpose.msra.mxu0 0.0
    %1082 = vmatprep.subr.mxu0 0.0
    %1083 = vmatpush2.xpose.msra.mxu0 0.0
    %1084 = vmatprep.subr.mxu0 0.0
    %1085 = vmatpush2.xpose.msra.mxu0 0.0
    %1086 = vmatprep.subr.mxu0 0.0
    %1087 = vmatpush2.xpose.msra.mxu0 0.0
    %1088 = vmatprep.mubr.f32.mxu0 0.0
    %1089 = vmatmul.mubr.f32.gmra.mxu0 %v960
    %v1090 = vpop.f32.mrf.mxu0
    %v1091 = vadd.f32 %v987, %v1090
    %v1092 = vpop.f32.mrf.mxu0
    %1093 = vdwg.mxu0
    %1094 = vmatprep.subr.mxu0 0.0
    %1095 = vmatpush1.xpose.msra.mxu0 %v86
    %1096 = vmatprep.subr.mxu0 0.0
    %1097 = vmatpush1.xpose.msra.mxu0 %v85
    %1098 = vmatprep.subr.mxu0 0.0
    %1099 = vmatpush1.xpose.msra.mxu0 %v84
    %1100 = vmatprep.subr.mxu0 0.0
    %1101 = vmatpush1.xpose.msra.mxu0 %v83
    %1102 = vmatprep.subr.mxu0 0.0
    %1103 = vmatpush1.xpose.msra.mxu0 %v82
    %1104 = vmatprep.subr.mxu0 0.0
    %1105 = vmatpush1.xpose.msra.mxu0 %v81
    %1106 = vmatprep.subr.mxu0 0.0
    %1107 = vmatpush1.xpose.msra.mxu0 %v80
    %1108 = vmatprep.subr.mxu0 0.0
    %1109 = vmatpush1.xpose.msra.mxu0 %v79
    %1110 = vmatprep.subr.mxu0 0.0
    %1111 = vmatpush1.xpose.msra.mxu0 %v78
    %1112 = vmatprep.subr.mxu0 0.0
    %1113 = vmatpush1.xpose.msra.mxu0 %v77
    %1114 = vmatprep.subr.mxu0 0.0
    %1115 = vmatpush1.xpose.msra.mxu0 %v76
    %1116 = vmatprep.subr.mxu0 0.0
    %1117 = vmatpush1.xpose.msra.mxu0 %v75
    %1118 = vmatprep.subr.mxu0 0.0
    %1119 = vmatpush1.xpose.msra.mxu0 %v74
    %1120 = vmatprep.subr.mxu0 0.0
    %1121 = vmatpush1.xpose.msra.mxu0 %v73
    %1122 = vmatprep.subr.mxu0 0.0
    %1123 = vmatpush1.xpose.msra.mxu0 %v72
    %1124 = vmatprep.subr.mxu0 0.0
    %1125 = vmatpush1.xpose.msra.mxu0 %v71
    %1126 = vmatprep.subr.mxu0 0.0
    %1127 = vmatpush2.xpose.msra.mxu0 0.0
    %1128 = vmatprep.subr.mxu0 0.0
    %1129 = vmatpush2.xpose.msra.mxu0 0.0
    %1130 = vmatprep.subr.mxu0 0.0
    %1131 = vmatpush2.xpose.msra.mxu0 0.0
    %1132 = vmatprep.subr.mxu0 0.0
    %1133 = vmatpush2.xpose.msra.mxu0 0.0
    %1134 = vmatprep.subr.mxu0 0.0
    %1135 = vmatpush2.xpose.msra.mxu0 0.0
    %1136 = vmatprep.subr.mxu0 0.0
    %1137 = vmatpush2.xpose.msra.mxu0 0.0
    %1138 = vmatprep.subr.mxu0 0.0
    %1139 = vmatpush2.xpose.msra.mxu0 0.0
    %1140 = vmatprep.subr.mxu0 0.0
    %1141 = vmatpush2.xpose.msra.mxu0 0.0
    %1142 = vmatprep.subr.mxu0 0.0
    %1143 = vmatpush2.xpose.msra.mxu0 0.0
    %1144 = vmatprep.subr.mxu0 0.0
    %1145 = vmatpush2.xpose.msra.mxu0 0.0
    %1146 = vmatprep.subr.mxu0 0.0
    %1147 = vmatpush2.xpose.msra.mxu0 0.0
    %1148 = vmatprep.subr.mxu0 0.0
    %1149 = vmatpush2.xpose.msra.mxu0 0.0
    %1150 = vmatprep.subr.mxu0 0.0
    %1151 = vmatpush2.xpose.msra.mxu0 0.0
    %1152 = vmatprep.subr.mxu0 0.0
    %1153 = vmatpush2.xpose.msra.mxu0 0.0
    %1154 = vmatprep.subr.mxu0 0.0
    %1155 = vmatpush2.xpose.msra.mxu0 0.0
    %1156 = vmatprep.subr.mxu0 0.0
    %1157 = vmatpush2.xpose.msra.mxu0 0.0
    %1158 = vmatprep.mubr.f32.mxu0 0.0
    %1159 = vmatmul.mubr.f32.gmra.mxu0 %v961
    %v1160 = vpop.f32.mrf.mxu0
    %v1161 = vadd.f32 %v991, %v1160
    %v1162 = vpop.f32.mrf.mxu0
    %1163 = vdwg.mxu0
    %1164 = vmatprep.subr.mxu0 0.0
    %1165 = vmatpush1.xpose.msra.mxu0 %v102
    %1166 = vmatprep.subr.mxu0 0.0
    %1167 = vmatpush1.xpose.msra.mxu0 %v101
    %1168 = vmatprep.subr.mxu0 0.0
    %1169 = vmatpush1.xpose.msra.mxu0 %v100
    %1170 = vmatprep.subr.mxu0 0.0
    %1171 = vmatpush1.xpose.msra.mxu0 %v99
    %1172 = vmatprep.subr.mxu0 0.0
    %1173 = vmatpush1.xpose.msra.mxu0 %v98
    %1174 = vmatprep.subr.mxu0 0.0
    %1175 = vmatpush1.xpose.msra.mxu0 %v97
    %1176 = vmatprep.subr.mxu0 0.0
    %1177 = vmatpush1.xpose.msra.mxu0 %v96
    %1178 = vmatprep.subr.mxu0 0.0
    %1179 = vmatpush1.xpose.msra.mxu0 %v95
    %1180 = vmatprep.subr.mxu0 0.0
    %1181 = vmatpush1.xpose.msra.mxu0 %v94
    %1182 = vmatprep.subr.mxu0 0.0
    %1183 = vmatpush1.xpose.msra.mxu0 %v93
    %1184 = vmatprep.subr.mxu0 0.0
    %1185 = vmatpush1.xpose.msra.mxu0 %v92
    %1186 = vmatprep.subr.mxu0 0.0
    %1187 = vmatpush1.xpose.msra.mxu0 %v91
    %1188 = vmatprep.subr.mxu0 0.0
    %1189 = vmatpush1.xpose.msra.mxu0 %v90
    %1190 = vmatprep.subr.mxu0 0.0
    %1191 = vmatpush1.xpose.msra.mxu0 %v89
    %1192 = vmatprep.subr.mxu0 0.0
    %1193 = vmatpush1.xpose.msra.mxu0 %v88
    %1194 = vmatprep.subr.mxu0 0.0
    %1195 = vmatpush1.xpose.msra.mxu0 %v87
    %1196 = vmatprep.subr.mxu0 0.0
    %1197 = vmatpush2.xpose.msra.mxu0 0.0
    %1198 = vmatprep.subr.mxu0 0.0
    %1199 = vmatpush2.xpose.msra.mxu0 0.0
    %1200 = vmatprep.subr.mxu0 0.0
    %1201 = vmatpush2.xpose.msra.mxu0 0.0
    %1202 = vmatprep.subr.mxu0 0.0
    %1203 = vmatpush2.xpose.msra.mxu0 0.0
    %1204 = vmatprep.subr.mxu0 0.0
    %1205 = vmatpush2.xpose.msra.mxu0 0.0
    %1206 = vmatprep.subr.mxu0 0.0
    %1207 = vmatpush2.xpose.msra.mxu0 0.0
    %1208 = vmatprep.subr.mxu0 0.0
    %1209 = vmatpush2.xpose.msra.mxu0 0.0
    %1210 = vmatprep.subr.mxu0 0.0
    %1211 = vmatpush2.xpose.msra.mxu0 0.0
    %1212 = vmatprep.subr.mxu0 0.0
    %1213 = vmatpush2.xpose.msra.mxu0 0.0
    %1214 = vmatprep.subr.mxu0 0.0
    %1215 = vmatpush2.xpose.msra.mxu0 0.0
    %1216 = vmatprep.subr.mxu0 0.0
    %1217 = vmatpush2.xpose.msra.mxu0 0.0
    %1218 = vmatprep.subr.mxu0 0.0
    %1219 = vmatpush2.xpose.msra.mxu0 0.0
    %1220 = vmatprep.subr.mxu0 0.0
    %1221 = vmatpush2.xpose.msra.mxu0 0.0
    %1222 = vmatprep.subr.mxu0 0.0
    %1223 = vmatpush2.xpose.msra.mxu0 0.0
    %1224 = vmatprep.subr.mxu0 0.0
    %1225 = vmatpush2.xpose.msra.mxu0 0.0
    %1226 = vmatprep.subr.mxu0 0.0
    %1227 = vmatpush2.xpose.msra.mxu0 0.0
    %1228 = vmatprep.mubr.f32.mxu0 0.0
    %1229 = vmatmul.mubr.f32.gmra.mxu0 %v962
    %v1230 = vpop.f32.mrf.mxu0
    %v1231 = vadd.f32 %v995, %v1230
    %v1232 = vpop.f32.mrf.mxu0
    %1233 = vdwg.mxu0
    %1234 = vmatprep.subr.mxu0 0.0
    %1235 = vmatpush1.xpose.msra.mxu0 %v118
    %1236 = vmatprep.subr.mxu0 0.0
    %1237 = vmatpush1.xpose.msra.mxu0 %v117
    %1238 = vmatprep.subr.mxu0 0.0
    %1239 = vmatpush1.xpose.msra.mxu0 %v116
    %1240 = vmatprep.subr.mxu0 0.0
    %1241 = vmatpush1.xpose.msra.mxu0 %v115
    %1242 = vmatprep.subr.mxu0 0.0
    %1243 = vmatpush1.xpose.msra.mxu0 %v114
    %1244 = vmatprep.subr.mxu0 0.0
    %1245 = vmatpush1.xpose.msra.mxu0 %v113
    %1246 = vmatprep.subr.mxu0 0.0
    %1247 = vmatpush1.xpose.msra.mxu0 %v112
    %1248 = vmatprep.subr.mxu0 0.0
    %1249 = vmatpush1.xpose.msra.mxu0 %v111
    %1250 = vmatprep.subr.mxu0 0.0
    %1251 = vmatpush1.xpose.msra.mxu0 %v110
    %1252 = vmatprep.subr.mxu0 0.0
    %1253 = vmatpush1.xpose.msra.mxu0 %v109
    %1254 = vmatprep.subr.mxu0 0.0
    %1255 = vmatpush1.xpose.msra.mxu0 %v108
    %1256 = vmatprep.subr.mxu0 0.0
    %1257 = vmatpush1.xpose.msra.mxu0 %v107
    %1258 = vmatprep.subr.mxu0 0.0
    %1259 = vmatpush1.xpose.msra.mxu0 %v106
    %1260 = vmatprep.subr.mxu0 0.0
    %1261 = vmatpush1.xpose.msra.mxu0 %v105
    %1262 = vmatprep.subr.mxu0 0.0
    %1263 = vmatpush1.xpose.msra.mxu0 %v104
    %1264 = vmatprep.subr.mxu0 0.0
    %1265 = vmatpush1.xpose.msra.mxu0 %v103
    %1266 = vmatprep.subr.mxu0 0.0
    %1267 = vmatpush2.xpose.msra.mxu0 0.0
    %1268 = vmatprep.subr.mxu0 0.0
    %1269 = vmatpush2.xpose.msra.mxu0 0.0
    %1270 = vmatprep.subr.mxu0 0.0
    %1271 = vmatpush2.xpose.msra.mxu0 0.0
    %1272 = vmatprep.subr.mxu0 0.0
    %1273 = vmatpush2.xpose.msra.mxu0 0.0
    %1274 = vmatprep.subr.mxu0 0.0
    %1275 = vmatpush2.xpose.msra.mxu0 0.0
    %1276 = vmatprep.subr.mxu0 0.0
    %1277 = vmatpush2.xpose.msra.mxu0 0.0
    %1278 = vmatprep.subr.mxu0 0.0
    %1279 = vmatpush2.xpose.msra.mxu0 0.0
    %1280 = vmatprep.subr.mxu0 0.0
    %1281 = vmatpush2.xpose.msra.mxu0 0.0
    %1282 = vmatprep.subr.mxu0 0.0
    %1283 = vmatpush2.xpose.msra.mxu0 0.0
    %1284 = vmatprep.subr.mxu0 0.0
    %1285 = vmatpush2.xpose.msra.mxu0 0.0
    %1286 = vmatprep.subr.mxu0 0.0
    %1287 = vmatpush2.xpose.msra.mxu0 0.0
    %1288 = vmatprep.subr.mxu0 0.0
    %1289 = vmatpush2.xpose.msra.mxu0 0.0
    %1290 = vmatprep.subr.mxu0 0.0
    %1291 = vmatpush2.xpose.msra.mxu0 0.0
    %1292 = vmatprep.subr.mxu0 0.0
    %1293 = vmatpush2.xpose.msra.mxu0 0.0
    %1294 = vmatprep.subr.mxu0 0.0
    %1295 = vmatpush2.xpose.msra.mxu0 0.0
    %1296 = vmatprep.subr.mxu0 0.0
    %1297 = vmatpush2.xpose.msra.mxu0 0.0
    %1298 = vmatprep.mubr.f32.mxu0 0.0
    %1299 = vmatmul.mubr.f32.gmra.mxu0 %v963
    %v1300 = vpop.f32.mrf.mxu0
    %v1301 = vadd.f32 %v999, %v1300
    %v1302 = vpop.f32.mrf.mxu0
    %1303 = vdwg.mxu0
    %1304 = vmatprep.subr.mxu0 0.0
    %1305 = vmatpush1.xpose.msra.mxu0 %v134
    %1306 = vmatprep.subr.mxu0 0.0
    %1307 = vmatpush1.xpose.msra.mxu0 %v133
    %1308 = vmatprep.subr.mxu0 0.0
    %1309 = vmatpush1.xpose.msra.mxu0 %v132
    %1310 = vmatprep.subr.mxu0 0.0
    %1311 = vmatpush1.xpose.msra.mxu0 %v131
    %1312 = vmatprep.subr.mxu0 0.0
    %1313 = vmatpush1.xpose.msra.mxu0 %v130
    %1314 = vmatprep.subr.mxu0 0.0
    %1315 = vmatpush1.xpose.msra.mxu0 %v129
    %1316 = vmatprep.subr.mxu0 0.0
    %1317 = vmatpush1.xpose.msra.mxu0 %v128
    %1318 = vmatprep.subr.mxu0 0.0
    %1319 = vmatpush1.xpose.msra.mxu0 %v127
    %1320 = vmatprep.subr.mxu0 0.0
    %1321 = vmatpush1.xpose.msra.mxu0 %v126
    %1322 = vmatprep.subr.mxu0 0.0
    %1323 = vmatpush1.xpose.msra.mxu0 %v125
    %1324 = vmatprep.subr.mxu0 0.0
    %1325 = vmatpush1.xpose.msra.mxu0 %v124
    %1326 = vmatprep.subr.mxu0 0.0
    %1327 = vmatpush1.xpose.msra.mxu0 %v123
    %1328 = vmatprep.subr.mxu0 0.0
    %1329 = vmatpush1.xpose.msra.mxu0 %v122
    %1330 = vmatprep.subr.mxu0 0.0
    %1331 = vmatpush1.xpose.msra.mxu0 %v121
    %1332 = vmatprep.subr.mxu0 0.0
    %1333 = vmatpush1.xpose.msra.mxu0 %v120
    %1334 = vmatprep.subr.mxu0 0.0
    %1335 = vmatpush1.xpose.msra.mxu0 %v119
    %1336 = vmatprep.subr.mxu0 0.0
    %1337 = vmatpush2.xpose.msra.mxu0 0.0
    %1338 = vmatprep.subr.mxu0 0.0
    %1339 = vmatpush2.xpose.msra.mxu0 0.0
    %1340 = vmatprep.subr.mxu0 0.0
    %1341 = vmatpush2.xpose.msra.mxu0 0.0
    %1342 = vmatprep.subr.mxu0 0.0
    %1343 = vmatpush2.xpose.msra.mxu0 0.0
    %1344 = vmatprep.subr.mxu0 0.0
    %1345 = vmatpush2.xpose.msra.mxu0 0.0
    %1346 = vmatprep.subr.mxu0 0.0
    %1347 = vmatpush2.xpose.msra.mxu0 0.0
    %1348 = vmatprep.subr.mxu0 0.0
    %1349 = vmatpush2.xpose.msra.mxu0 0.0
    %1350 = vmatprep.subr.mxu0 0.0
    %1351 = vmatpush2.xpose.msra.mxu0 0.0
    %1352 = vmatprep.subr.mxu0 0.0
    %1353 = vmatpush2.xpose.msra.mxu0 0.0
    %1354 = vmatprep.subr.mxu0 0.0
    %1355 = vmatpush2.xpose.msra.mxu0 0.0
    %1356 = vmatprep.subr.mxu0 0.0
    %1357 = vmatpush2.xpose.msra.mxu0 0.0
    %1358 = vmatprep.subr.mxu0 0.0
    %1359 = vmatpush2.xpose.msra.mxu0 0.0
    %1360 = vmatprep.subr.mxu0 0.0
    %1361 = vmatpush2.xpose.msra.mxu0 0.0
    %1362 = vmatprep.subr.mxu0 0.0
    %1363 = vmatpush2.xpose.msra.mxu0 0.0
    %1364 = vmatprep.subr.mxu0 0.0
    %1365 = vmatpush2.xpose.msra.mxu0 0.0
    %1366 = vmatprep.subr.mxu0 0.0
    %1367 = vmatpush2.xpose.msra.mxu0 0.0
    %1368 = vmatprep.mubr.f32.mxu0 0.0
    %1369 = vmatmul.mubr.f32.gmra.mxu0 %v964
    %v1370 = vpop.f32.mrf.mxu0
    %v1371 = vadd.f32 %v1003, %v1370
    %v1372 = vpop.f32.mrf.mxu0
    %1373 = vdwg.mxu0
    %1374 = vmatprep.subr.mxu0 0.0
    %1375 = vmatpush1.xpose.msra.mxu0 %v150
    %1376 = vmatprep.subr.mxu0 0.0
    %1377 = vmatpush1.xpose.msra.mxu0 %v149
    %1378 = vmatprep.subr.mxu0 0.0
    %1379 = vmatpush1.xpose.msra.mxu0 %v148
    %1380 = vmatprep.subr.mxu0 0.0
    %1381 = vmatpush1.xpose.msra.mxu0 %v147
    %1382 = vmatprep.subr.mxu0 0.0
    %1383 = vmatpush1.xpose.msra.mxu0 %v146
    %1384 = vmatprep.subr.mxu0 0.0
    %1385 = vmatpush1.xpose.msra.mxu0 %v145
    %1386 = vmatprep.subr.mxu0 0.0
    %1387 = vmatpush1.xpose.msra.mxu0 %v144
    %1388 = vmatprep.subr.mxu0 0.0
    %1389 = vmatpush1.xpose.msra.mxu0 %v143
    %1390 = vmatprep.subr.mxu0 0.0
    %1391 = vmatpush1.xpose.msra.mxu0 %v142
    %1392 = vmatprep.subr.mxu0 0.0
    %1393 = vmatpush1.xpose.msra.mxu0 %v141
    %1394 = vmatprep.subr.mxu0 0.0
    %1395 = vmatpush1.xpose.msra.mxu0 %v140
    %1396 = vmatprep.subr.mxu0 0.0
    %1397 = vmatpush1.xpose.msra.mxu0 %v139
    %1398 = vmatprep.subr.mxu0 0.0
    %1399 = vmatpush1.xpose.msra.mxu0 %v138
    %1400 = vmatprep.subr.mxu0 0.0
    %1401 = vmatpush1.xpose.msra.mxu0 %v137
    %1402 = vmatprep.subr.mxu0 0.0
    %1403 = vmatpush1.xpose.msra.mxu0 %v136
    %1404 = vmatprep.subr.mxu0 0.0
    %1405 = vmatpush1.xpose.msra.mxu0 %v135
    %1406 = vmatprep.subr.mxu0 0.0
    %1407 = vmatpush2.xpose.msra.mxu0 0.0
    %1408 = vmatprep.subr.mxu0 0.0
    %1409 = vmatpush2.xpose.msra.mxu0 0.0
    %1410 = vmatprep.subr.mxu0 0.0
    %1411 = vmatpush2.xpose.msra.mxu0 0.0
    %1412 = vmatprep.subr.mxu0 0.0
    %1413 = vmatpush2.xpose.msra.mxu0 0.0
    %1414 = vmatprep.subr.mxu0 0.0
    %1415 = vmatpush2.xpose.msra.mxu0 0.0
    %1416 = vmatprep.subr.mxu0 0.0
    %1417 = vmatpush2.xpose.msra.mxu0 0.0
    %1418 = vmatprep.subr.mxu0 0.0
    %1419 = vmatpush2.xpose.msra.mxu0 0.0
    %1420 = vmatprep.subr.mxu0 0.0
    %1421 = vmatpush2.xpose.msra.mxu0 0.0
    %1422 = vmatprep.subr.mxu0 0.0
    %1423 = vmatpush2.xpose.msra.mxu0 0.0
    %1424 = vmatprep.subr.mxu0 0.0
    %1425 = vmatpush2.xpose.msra.mxu0 0.0
    %1426 = vmatprep.subr.mxu0 0.0
    %1427 = vmatpush2.xpose.msra.mxu0 0.0
    %1428 = vmatprep.subr.mxu0 0.0
    %1429 = vmatpush2.xpose.msra.mxu0 0.0
    %1430 = vmatprep.subr.mxu0 0.0
    %1431 = vmatpush2.xpose.msra.mxu0 0.0
    %1432 = vmatprep.subr.mxu0 0.0
    %1433 = vmatpush2.xpose.msra.mxu0 0.0
    %1434 = vmatprep.subr.mxu0 0.0
    %1435 = vmatpush2.xpose.msra.mxu0 0.0
    %1436 = vmatprep.subr.mxu0 0.0
    %1437 = vmatpush2.xpose.msra.mxu0 0.0
    %1438 = vmatprep.mubr.f32.mxu0 0.0
    %1439 = vmatmul.mubr.f32.gmra.mxu0 %v965
    %v1440 = vpop.f32.mrf.mxu0
    %v1441 = vadd.f32 %v1007, %v1440
    %v1442 = vpop.f32.mrf.mxu0
    %1443 = vdwg.mxu0
    %1444 = vmatprep.subr.mxu0 0.0
    %1445 = vmatpush1.xpose.msra.mxu0 %v166
    %1446 = vmatprep.subr.mxu0 0.0
    %1447 = vmatpush1.xpose.msra.mxu0 %v165
    %1448 = vmatprep.subr.mxu0 0.0
    %1449 = vmatpush1.xpose.msra.mxu0 %v164
    %1450 = vmatprep.subr.mxu0 0.0
    %1451 = vmatpush1.xpose.msra.mxu0 %v163
    %1452 = vmatprep.subr.mxu0 0.0
    %1453 = vmatpush1.xpose.msra.mxu0 %v162
    %1454 = vmatprep.subr.mxu0 0.0
    %1455 = vmatpush1.xpose.msra.mxu0 %v161
    %1456 = vmatprep.subr.mxu0 0.0
    %1457 = vmatpush1.xpose.msra.mxu0 %v160
    %1458 = vmatprep.subr.mxu0 0.0
    %1459 = vmatpush1.xpose.msra.mxu0 %v159
    %1460 = vmatprep.subr.mxu0 0.0
    %1461 = vmatpush1.xpose.msra.mxu0 %v158
    %1462 = vmatprep.subr.mxu0 0.0
    %1463 = vmatpush1.xpose.msra.mxu0 %v157
    %1464 = vmatprep.subr.mxu0 0.0
    %1465 = vmatpush1.xpose.msra.mxu0 %v156
    %1466 = vmatprep.subr.mxu0 0.0
    %1467 = vmatpush1.xpose.msra.mxu0 %v155
    %1468 = vmatprep.subr.mxu0 0.0
    %1469 = vmatpush1.xpose.msra.mxu0 %v154
    %1470 = vmatprep.subr.mxu0 0.0
    %1471 = vmatpush1.xpose.msra.mxu0 %v153
    %1472 = vmatprep.subr.mxu0 0.0
    %1473 = vmatpush1.xpose.msra.mxu0 %v152
    %1474 = vmatprep.subr.mxu0 0.0
    %1475 = vmatpush1.xpose.msra.mxu0 %v151
    %1476 = vmatprep.subr.mxu0 0.0
    %1477 = vmatpush2.xpose.msra.mxu0 0.0
    %1478 = vmatprep.subr.mxu0 0.0
    %1479 = vmatpush2.xpose.msra.mxu0 0.0
    %1480 = vmatprep.subr.mxu0 0.0
    %1481 = vmatpush2.xpose.msra.mxu0 0.0
    %1482 = vmatprep.subr.mxu0 0.0
    %1483 = vmatpush2.xpose.msra.mxu0 0.0
    %1484 = vmatprep.subr.mxu0 0.0
    %1485 = vmatpush2.xpose.msra.mxu0 0.0
    %1486 = vmatprep.subr.mxu0 0.0
    %1487 = vmatpush2.xpose.msra.mxu0 0.0
    %1488 = vmatprep.subr.mxu0 0.0
    %1489 = vmatpush2.xpose.msra.mxu0 0.0
    %1490 = vmatprep.subr.mxu0 0.0
    %1491 = vmatpush2.xpose.msra.mxu0 0.0
    %1492 = vmatprep.subr.mxu0 0.0
    %1493 = vmatpush2.xpose.msra.mxu0 0.0
    %1494 = vmatprep.subr.mxu0 0.0
    %1495 = vmatpush2.xpose.msra.mxu0 0.0
    %1496 = vmatprep.subr.mxu0 0.0
    %1497 = vmatpush2.xpose.msra.mxu0 0.0
    %1498 = vmatprep.subr.mxu0 0.0
    %1499 = vmatpush2.xpose.msra.mxu0 0.0
    %1500 = vmatprep.subr.mxu0 0.0
    %1501 = vmatpush2.xpose.msra.mxu0 0.0
    %1502 = vmatprep.subr.mxu0 0.0
    %1503 = vmatpush2.xpose.msra.mxu0 0.0
    %1504 = vmatprep.subr.mxu0 0.0
    %1505 = vmatpush2.xpose.msra.mxu0 0.0
    %1506 = vmatprep.subr.mxu0 0.0
    %1507 = vmatpush2.xpose.msra.mxu0 0.0
    %1508 = vmatprep.mubr.f32.mxu0 0.0
    %1509 = vmatmul.mubr.f32.gmra.mxu0 %v966
    %v1510 = vpop.f32.mrf.mxu0
    %v1511 = vadd.f32 %v1011, %v1510
    %v1512 = vpop.f32.mrf.mxu0
    %1513 = vdwg.mxu0
    %1514 = vmatprep.subr.mxu0 0.0
    %1515 = vmatpush1.xpose.msra.mxu0 %v182
    %1516 = vmatprep.subr.mxu0 0.0
    %1517 = vmatpush1.xpose.msra.mxu0 %v181
    %1518 = vmatprep.subr.mxu0 0.0
    %1519 = vmatpush1.xpose.msra.mxu0 %v180
    %1520 = vmatprep.subr.mxu0 0.0
    %1521 = vmatpush1.xpose.msra.mxu0 %v179
    %1522 = vmatprep.subr.mxu0 0.0
    %1523 = vmatpush1.xpose.msra.mxu0 %v178
    %1524 = vmatprep.subr.mxu0 0.0
    %1525 = vmatpush1.xpose.msra.mxu0 %v177
    %1526 = vmatprep.subr.mxu0 0.0
    %1527 = vmatpush1.xpose.msra.mxu0 %v176
    %1528 = vmatprep.subr.mxu0 0.0
    %1529 = vmatpush1.xpose.msra.mxu0 %v175
    %1530 = vmatprep.subr.mxu0 0.0
    %1531 = vmatpush1.xpose.msra.mxu0 %v174
    %1532 = vmatprep.subr.mxu0 0.0
    %1533 = vmatpush1.xpose.msra.mxu0 %v173
    %1534 = vmatprep.subr.mxu0 0.0
    %1535 = vmatpush1.xpose.msra.mxu0 %v172
    %1536 = vmatprep.subr.mxu0 0.0
    %1537 = vmatpush1.xpose.msra.mxu0 %v171
    %1538 = vmatprep.subr.mxu0 0.0
    %1539 = vmatpush1.xpose.msra.mxu0 %v170
    %1540 = vmatprep.subr.mxu0 0.0
    %1541 = vmatpush1.xpose.msra.mxu0 %v169
    %1542 = vmatprep.subr.mxu0 0.0
    %1543 = vmatpush1.xpose.msra.mxu0 %v168
    %1544 = vmatprep.subr.mxu0 0.0
    %1545 = vmatpush1.xpose.msra.mxu0 %v167
    %1546 = vmatprep.subr.mxu0 0.0
    %1547 = vmatpush2.xpose.msra.mxu0 0.0
    %1548 = vmatprep.subr.mxu0 0.0
    %1549 = vmatpush2.xpose.msra.mxu0 0.0
    %1550 = vmatprep.subr.mxu0 0.0
    %1551 = vmatpush2.xpose.msra.mxu0 0.0
    %1552 = vmatprep.subr.mxu0 0.0
    %1553 = vmatpush2.xpose.msra.mxu0 0.0
    %1554 = vmatprep.subr.mxu0 0.0
    %1555 = vmatpush2.xpose.msra.mxu0 0.0
    %1556 = vmatprep.subr.mxu0 0.0
    %1557 = vmatpush2.xpose.msra.mxu0 0.0
    %1558 = vmatprep.subr.mxu0 0.0
    %1559 = vmatpush2.xpose.msra.mxu0 0.0
    %1560 = vmatprep.subr.mxu0 0.0
    %1561 = vmatpush2.xpose.msra.mxu0 0.0
    %1562 = vmatprep.subr.mxu0 0.0
    %1563 = vmatpush2.xpose.msra.mxu0 0.0
    %1564 = vmatprep.subr.mxu0 0.0
    %1565 = vmatpush2.xpose.msra.mxu0 0.0
    %1566 = vmatprep.subr.mxu0 0.0
    %1567 = vmatpush2.xpose.msra.mxu0 0.0
    %1568 = vmatprep.subr.mxu0 0.0
    %1569 = vmatpush2.xpose.msra.mxu0 0.0
    %1570 = vmatprep.subr.mxu0 0.0
    %1571 = vmatpush2.xpose.msra.mxu0 0.0
    %1572 = vmatprep.subr.mxu0 0.0
    %1573 = vmatpush2.xpose.msra.mxu0 0.0
    %1574 = vmatprep.subr.mxu0 0.0
    %1575 = vmatpush2.xpose.msra.mxu0 0.0
    %1576 = vmatprep.subr.mxu0 0.0
    %1577 = vmatpush2.xpose.msra.mxu0 0.0
    %1578 = vmatprep.mubr.f32.mxu0 0.0
    %1579 = vmatmul.mubr.f32.gmra.mxu0 %v967
    %v1580 = vpop.f32.mrf.mxu0
    %v1581 = vadd.f32 %v1015, %v1580
    %v1582 = vpop.f32.mrf.mxu0
    %1583 = vdwg.mxu0
    %v1586 = vunpack.c.l.s4 1966171168
    %v1587 = vunpack.c.0.s8 %v1586
    %v1588 = vlaneseq
    %v1589 = vshrl.u32 %v1588, 7
    %v1590 = vsub.s32 %v1587, %v1589
    %v1591 = vrot.slane %v1091, %v1590
    %v1592 = vcombine.high %v1591, %v1591
    %v1594 = vunpack.c.l.s4 1966171168
    %v1595 = vunpack.c.0.s8 %v1594
    %v1596 = vlaneseq
    %v1597 = vshrl.u32 %v1596, 7
    %v1598 = vsub.s32 %v1595, %v1597
    %v1599 = vrot.slane %v1591, %v1598
    %v1601 = vunpack.c.l.s4 1966171168
    %v1602 = vunpack.c.0.s8 %v1601
    %v1603 = vlaneseq
    %v1604 = vshrl.u32 %v1603, 7
    %v1605 = vsub.s32 %v1602, %v1604
    %v1606 = vrot.slane %v1592, %v1605
    %1609 = vst [vmem:[#allocation8] sm:$0x1] %v1599
    %1610 = vst [vmem:[#allocation8 + $0x8] sm:$0x1] %v1606
    %v1613 = vunpack.c.l.s4 1966171168
    %v1614 = vunpack.c.0.s8 %v1613
    %v1615 = vlaneseq
    %v1616 = vshrl.u32 %v1615, 7
    %v1617 = vsub.s32 %v1614, %v1616
    %v1618 = vrot.slane %v1161, %v1617
    %v1619 = vcombine.high %v1618, %v1618
    %v1621 = vunpack.c.l.s4 1966171168
    %v1622 = vunpack.c.0.s8 %v1621
    %v1623 = vlaneseq
    %v1624 = vshrl.u32 %v1623, 7
    %v1625 = vsub.s32 %v1622, %v1624
    %v1626 = vrot.slane %v1618, %v1625
    %v1628 = vunpack.c.l.s4 1966171168
    %v1629 = vunpack.c.0.s8 %v1628
    %v1630 = vlaneseq
    %v1631 = vshrl.u32 %v1630, 7
    %v1632 = vsub.s32 %v1629, %v1631
    %v1633 = vrot.slane %v1619, %v1632
    %1636 = vst [vmem:[#allocation8 + $0x1] sm:$0x1] %v1626
    %1637 = vst [vmem:[#allocation8 + $0x9] sm:$0x1] %v1633
    %v1640 = vunpack.c.l.s4 1966171168
    %v1641 = vunpack.c.0.s8 %v1640
    %v1642 = vlaneseq
    %v1643 = vshrl.u32 %v1642, 7
    %v1644 = vsub.s32 %v1641, %v1643
    %v1645 = vrot.slane %v1231, %v1644
    %v1646 = vcombine.high %v1645, %v1645
    %v1648 = vunpack.c.l.s4 1966171168
    %v1649 = vunpack.c.0.s8 %v1648
    %v1650 = vlaneseq
    %v1651 = vshrl.u32 %v1650, 7
    %v1652 = vsub.s32 %v1649, %v1651
    %v1653 = vrot.slane %v1645, %v1652
    %v1655 = vunpack.c.l.s4 1966171168
    %v1656 = vunpack.c.0.s8 %v1655
    %v1657 = vlaneseq
    %v1658 = vshrl.u32 %v1657, 7
    %v1659 = vsub.s32 %v1656, %v1658
    %v1660 = vrot.slane %v1646, %v1659
    %1663 = vst [vmem:[#allocation8 + $0x2] sm:$0x1] %v1653
    %1664 = vst [vmem:[#allocation8 + $0xa] sm:$0x1] %v1660
    %v1667 = vunpack.c.l.s4 1966171168
    %v1668 = vunpack.c.0.s8 %v1667
    %v1669 = vlaneseq
    %v1670 = vshrl.u32 %v1669, 7
    %v1671 = vsub.s32 %v1668, %v1670
    %v1672 = vrot.slane %v1301, %v1671
    %v1673 = vcombine.high %v1672, %v1672
    %v1675 = vunpack.c.l.s4 1966171168
    %v1676 = vunpack.c.0.s8 %v1675
    %v1677 = vlaneseq
    %v1678 = vshrl.u32 %v1677, 7
    %v1679 = vsub.s32 %v1676, %v1678
    %v1680 = vrot.slane %v1672, %v1679
    %v1682 = vunpack.c.l.s4 1966171168
    %v1683 = vunpack.c.0.s8 %v1682
    %v1684 = vlaneseq
    %v1685 = vshrl.u32 %v1684, 7
    %v1686 = vsub.s32 %v1683, %v1685
    %v1687 = vrot.slane %v1673, %v1686
    %1690 = vst [vmem:[#allocation8 + $0x3] sm:$0x1] %v1680
    %1691 = vst [vmem:[#allocation8 + $0xb] sm:$0x1] %v1687
    %v1694 = vunpack.c.l.s4 1966171168
    %v1695 = vunpack.c.0.s8 %v1694
    %v1696 = vlaneseq
    %v1697 = vshrl.u32 %v1696, 7
    %v1698 = vsub.s32 %v1695, %v1697
    %v1699 = vrot.slane %v1371, %v1698
    %v1700 = vcombine.high %v1699, %v1699
    %v1702 = vunpack.c.l.s4 1966171168
    %v1703 = vunpack.c.0.s8 %v1702
    %v1704 = vlaneseq
    %v1705 = vshrl.u32 %v1704, 7
    %v1706 = vsub.s32 %v1703, %v1705
    %v1707 = vrot.slane %v1699, %v1706
    %v1709 = vunpack.c.l.s4 1966171168
    %v1710 = vunpack.c.0.s8 %v1709
    %v1711 = vlaneseq
    %v1712 = vshrl.u32 %v1711, 7
    %v1713 = vsub.s32 %v1710, %v1712
    %v1714 = vrot.slane %v1700, %v1713
    %1717 = vst [vmem:[#allocation8 + $0x4] sm:$0x1] %v1707
    %1718 = vst [vmem:[#allocation8 + $0xc] sm:$0x1] %v1714
    %v1721 = vunpack.c.l.s4 1966171168
    %v1722 = vunpack.c.0.s8 %v1721
    %v1723 = vlaneseq
    %v1724 = vshrl.u32 %v1723, 7
    %v1725 = vsub.s32 %v1722, %v1724
    %v1726 = vrot.slane %v1441, %v1725
    %v1727 = vcombine.high %v1726, %v1726
    %v1729 = vunpack.c.l.s4 1966171168
    %v1730 = vunpack.c.0.s8 %v1729
    %v1731 = vlaneseq
    %v1732 = vshrl.u32 %v1731, 7
    %v1733 = vsub.s32 %v1730, %v1732
    %v1734 = vrot.slane %v1726, %v1733
    %v1736 = vunpack.c.l.s4 1966171168
    %v1737 = vunpack.c.0.s8 %v1736
    %v1738 = vlaneseq
    %v1739 = vshrl.u32 %v1738, 7
    %v1740 = vsub.s32 %v1737, %v1739
    %v1741 = vrot.slane %v1727, %v1740
    %1744 = vst [vmem:[#allocation8 + $0x5] sm:$0x1] %v1734
    %1745 = vst [vmem:[#allocation8 + $0xd] sm:$0x1] %v1741
    %v1748 = vunpack.c.l.s4 1966171168
    %v1749 = vunpack.c.0.s8 %v1748
    %v1750 = vlaneseq
    %v1751 = vshrl.u32 %v1750, 7
    %v1752 = vsub.s32 %v1749, %v1751
    %v1753 = vrot.slane %v1511, %v1752
    %v1754 = vcombine.high %v1753, %v1753
    %v1756 = vunpack.c.l.s4 1966171168
    %v1757 = vunpack.c.0.s8 %v1756
    %v1758 = vlaneseq
    %v1759 = vshrl.u32 %v1758, 7
    %v1760 = vsub.s32 %v1757, %v1759
    %v1761 = vrot.slane %v1753, %v1760
    %v1763 = vunpack.c.l.s4 1966171168
    %v1764 = vunpack.c.0.s8 %v1763
    %v1765 = vlaneseq
    %v1766 = vshrl.u32 %v1765, 7
    %v1767 = vsub.s32 %v1764, %v1766
    %v1768 = vrot.slane %v1754, %v1767
    %1771 = vst [vmem:[#allocation8 + $0x6] sm:$0x1] %v1761
    %1772 = vst [vmem:[#allocation8 + $0xe] sm:$0x1] %v1768
    %v1775 = vunpack.c.l.s4 1966171168
    %v1776 = vunpack.c.0.s8 %v1775
    %v1777 = vlaneseq
    %v1778 = vshrl.u32 %v1777, 7
    %v1779 = vsub.s32 %v1776, %v1778
    %v1780 = vrot.slane %v1581, %v1779
    %v1781 = vcombine.high %v1780, %v1780
    %v1783 = vunpack.c.l.s4 1966171168
    %v1784 = vunpack.c.0.s8 %v1783
    %v1785 = vlaneseq
    %v1786 = vshrl.u32 %v1785, 7
    %v1787 = vsub.s32 %v1784, %v1786
    %v1788 = vrot.slane %v1780, %v1787
    %v1790 = vunpack.c.l.s4 1966171168
    %v1791 = vunpack.c.0.s8 %v1790
    %v1792 = vlaneseq
    %v1793 = vshrl.u32 %v1792, 7
    %v1794 = vsub.s32 %v1791, %v1793
    %v1795 = vrot.slane %v1781, %v1794
    %1798 = vst [vmem:[#allocation8 + $0x7] sm:$0x1] %v1788
    %1799 = vst [vmem:[#allocation8 + $0xf] sm:$0x1] %v1795
    // Predicated region
    $region26: #{tpu_custom_call.1} parent=1 // pred_check
      _
    $region27: #{tpu_custom_call.1} parent=1 // pred_check_branch
      %1801 = sbr.rel (0) target = $region29
    $region28: #{tpu_custom_call.1} parent=1 // pred_region
      %s1803 = ssub.s32 256, 256
      %1804 = vsyncadd [#allocation4], %s1803
      %s1805 = sshll.u32 [#allocation8], 4
      %s1806 = int_to_ptr.vmem [resolvable:$true] %s1805
      %1811 = dma.vmem_to_hbm [thread:$0]  %s1806, 256, %s3, [#allocation4], 128, 128, 8
    $region29: #{tpu_custom_call.1} parent=1 // pred_fallthru
      _
    // Predicated region
    $region30: #{tpu_custom_call.1} parent=1 // pred_check
      _
    $region31: #{tpu_custom_call.1} parent=1 // pred_check_branch
      %1813 = sbr.rel (0) target = $region33
    $region32: #{tpu_custom_call.1} parent=1 // pred_region
      %1814 = dma.done [#allocation4], 256
    $region33: #{tpu_custom_call.1} parent=1 // pred_fallthru
      _
    %1815 = vsyncpa [#allocation3], 1
    %1816 = vsyncpa [#allocation6], 1
    %1817 = vsyncpa [#allocation4], 1

</llo_original>
